<compile_context>
chip_gen: v6e
topology: v6e:2x2x1
jax: 0.10.0
libtpu: 0.0.40
codegen_flags: <defaults>
</compile_context>

<pallas_src>
import functools

import jax
import jax.numpy as jnp
from jax.experimental import pallas as pl
from jax.experimental.pallas import tpu as pltpu


def _round_up(v, m):
    return (v + m - 1) // m * m


def _num_tensorcores():
    """2 TensorCores/chip on v7x, 1 on v5e/v6e.  Defaults to 1 if unknown."""
    try:
        kind = jax.devices()[0].device_kind.lower()
    except Exception:  # pragma: no cover
        return 1
    return 2 if ("v7" in kind or "tpu7" in kind) else 1


def _choose_tile(B, num_tc):
    """Batch tile + padded batch, generation-aware (see header comment)."""
    if num_tc >= 2:
        # Even 2-step "parallel" grid keeps both v7x TensorCores busy.
        tb = max(256, _round_up((B + num_tc - 1) // num_tc, 256))
    else:
        # Single TC: grid steps serialize; one big tile removes per-step overhead.
        tb = _round_up(B, 8)
    tb = min(tb, 2048)  # VMEM-safe cap (tb=2048 is a few MiB, well under scoped default)
    Bp = _round_up(B, tb)
    return tb, Bp


def residual_mlp_kernel(x_ref, w_in_ref, w_hid_ref, b_hid_ref, w_out_ref, b_out_ref, o_ref):
    bf16 = jnp.bfloat16
    f32 = jnp.float32
    relu = lambda v: jnp.maximum(v, 0.0)

    def dot(a_bf16, w_bf16):
        return jnp.dot(a_bf16, w_bf16, preferred_element_type=f32)

    x = x_ref[...]                      # (tb, Din) bf16 (cast done in jitted wrapper)
    b = b_hid_ref[...]                  # (5, H) f32: [b_in, b1a, b1b, b2a, b2b]

    # input_layer + relu  (h kept in f32 between layers)
    h = relu(dot(x, w_in_ref[...]) + b[0:1])

    # res_block1: fc1 -> relu -> (dropout = identity) -> fc2 -> +residual -> relu
    t = relu(dot(h.astype(bf16), w_hid_ref[0]) + b[1:2])
    h = relu(dot(t.astype(bf16), w_hid_ref[1]) + b[2:3] + h)

    # res_block2
    t = relu(dot(h.astype(bf16), w_hid_ref[2]) + b[3:4])
    h = relu(dot(t.astype(bf16), w_hid_ref[3]) + b[4:5] + h)

    # output_layer (no activation), lane-dense f32 output slab
    o_ref[...] = (dot(h.astype(bf16), w_out_ref[...]) + b_out_ref[...]).astype(o_ref.dtype)


def prepare_params(params):
    """One-time conversion of raw f32 params to packed, kernel-ready arrays."""
    bf = jnp.bfloat16
    f32 = jnp.float32
    hidden = params["w_in"].shape[1]
    num_classes = params["w_out"].shape[1]
    N = _round_up(num_classes, 128)

    w_in = params["w_in"].astype(bf)                                   # (Din, H)
    w_hid = jnp.stack(
        [params[k].astype(bf) for k in ("w1a", "w1b", "w2a", "w2b")]
    )                                                                  # (4, H, H)
    b_hid = jnp.concatenate(
        [params[k].astype(f32).reshape(1, hidden)
         for k in ("b_in", "b1a", "b1b", "b2a", "b2b")], axis=0
    )                                                                  # (5, H)
    w_out = jnp.zeros((hidden, N), bf).at[:, :num_classes].set(params["w_out"].astype(bf))
    b_out = jnp.zeros((1, N), f32).at[:, :num_classes].set(
        params["b_out"].astype(f32).reshape(1, -1)
    )
    prepared = (w_in, w_hid, b_hid, w_out, b_out)
    return prepared, num_classes


@functools.partial(jax.jit, static_argnames=("num_classes", "num_tc"))
def residual_mlp_forward(x, prepared, *, num_classes, num_tc):
    """Jitted forward: pad batch, cast x to bf16, run the kernel, slice output."""
    w_in, w_hid, b_hid, w_out, b_out = prepared
    B, Din = x.shape
    hidden = w_in.shape[1]
    N = w_out.shape[1]

    tb, Bp = _choose_tile(B, num_tc)
    xb = x.astype(jnp.bfloat16)
    if Bp != B:
        xb = jnp.pad(xb, ((0, Bp - B), (0, 0)))

    grid_spec = pl.GridSpec(
        grid=(Bp // tb,),
        in_specs=[
            pl.BlockSpec((tb, Din), lambda i: (i, 0)),          # x (last dim == full dim)
            pl.BlockSpec((Din, hidden), lambda i: (0, 0)),      # w_in (resident)
            pl.BlockSpec(w_hid.shape, lambda i: (0, 0, 0)),     # stacked hidden weights
            pl.BlockSpec(b_hid.shape, lambda i: (0, 0)),        # stacked hidden biases
            pl.BlockSpec((hidden, N), lambda i: (0, 0)),        # w_out
            pl.BlockSpec((1, N), lambda i: (0, 0)),             # b_out
        ],
        out_specs=pl.BlockSpec((tb, N), lambda i: (i, 0)),
    )

    out = pl.pallas_call(
        residual_mlp_kernel,
        out_shape=jax.ShapeDtypeStruct((Bp, N), jnp.float32),
        grid_spec=grid_spec,
        compiler_params=pltpu.CompilerParams(dimension_semantics=("parallel",)),
    )(xb, w_in, w_hid, b_hid, w_out, b_out)

    return out[:B, :num_classes]


def init_params(key, input_dim, hidden_dim, num_classes):
    """Deterministic synthetic parameters, stored as f32 (in, out) / (1, out)."""
    keys = jax.random.split(key, 12)

    def lin(kw, kb, fan_in, fan_out):
        bound = 1.0 / jnp.sqrt(fan_in)
        w = jax.random.uniform(kw, (fan_in, fan_out), jnp.float32, -bound, bound)
        b = jax.random.uniform(kb, (1, fan_out), jnp.float32, -bound, bound)
        return w, b

    p = {}
    p["w_in"], p["b_in"] = lin(keys[0], keys[1], input_dim, hidden_dim)
    p["w1a"], p["b1a"] = lin(keys[2], keys[3], hidden_dim, hidden_dim)
    p["w1b"], p["b1b"] = lin(keys[4], keys[5], hidden_dim, hidden_dim)
    p["w2a"], p["b2a"] = lin(keys[6], keys[7], hidden_dim, hidden_dim)
    p["w2b"], p["b2b"] = lin(keys[8], keys[9], hidden_dim, hidden_dim)
    p["w_out"], p["b_out"] = lin(keys[10], keys[11], hidden_dim, num_classes)
    return p


def reference(x, p):
    """Pure-JAX reference mirroring the kernel's bf16-matmul / f32-residual path."""
    bf = jnp.bfloat16
    f32 = jnp.float32
    relu = lambda v: jnp.maximum(v, 0.0)

    def lin(a, w, b):
        return jnp.dot(a.astype(bf), w.astype(bf), preferred_element_type=f32) + b.astype(f32)

    h = relu(lin(x, p["w_in"], p["b_in"]))
    t = relu(lin(h, p["w1a"], p["b1a"]))
    h = relu(lin(t, p["w1b"], p["b1b"]) + h)
    t = relu(lin(h, p["w2a"], p["b2a"]))
    h = relu(lin(t, p["w2b"], p["b2b"]) + h)
    return lin(h, p["w_out"], p["b_out"])


if __name__ == "__main__":
    key = jax.random.PRNGKey(0)
    k_x, k_p = jax.random.split(key)

    batch, input_dim, hidden_dim, num_classes = 512, 32, 128, 10
    x = jax.random.normal(k_x, (batch, input_dim), jnp.float32)
    params = init_params(k_p, input_dim, hidden_dim, num_classes)

    # One-time parameter prep (cast / stack / pad), reused across calls.
    prepared, n_cls = prepare_params(params)
    num_tc = _num_tensorcores()

    out = residual_mlp_forward(x, prepared, num_classes=n_cls, num_tc=num_tc)
    out = jax.block_until_ready(out)

    ref = reference(x, params)
    assert out.shape == (batch, num_classes)
    assert jnp.allclose(out, ref, atol=1e-2, rtol=1e-2), float(jnp.max(jnp.abs(out - ref)))
    print("KERNEL_OK")
</pallas_src>

<mosaic_0001>
module attributes {stable_mosaic.version = 11 : i64} {
  func.func @residual_mlp_kernel(%arg0: i32, %arg1: memref<512x32xbf16, #tpu.memory_space<vmem>>, %arg2: memref<32x128xbf16, #tpu.memory_space<vmem>>, %arg3: memref<4x128x128xbf16, #tpu.memory_space<vmem>>, %arg4: memref<5x128xf32, #tpu.memory_space<vmem>>, %arg5: memref<128x128xbf16, #tpu.memory_space<vmem>>, %arg6: memref<1x128xf32, #tpu.memory_space<vmem>>, %arg7: memref<512x128xf32, #tpu.memory_space<vmem>>) attributes {dimension_semantics = [#tpu.dimension_semantics<parallel>], iteration_bounds = array<i64: 1>, scalar_prefetch = 0 : i64, scratch_operands = 0 : i64, tpu.core_type = #tpu.core_type<tc>, window_params = [{transform_indices = @transform_0, window_bounds = array<i64: 512, 32>}, {pipeline_mode = #tpu.pipeline_mode<synchronous>, transform_indices = @transform_1, window_bounds = array<i64: 32, 128>}, {pipeline_mode = #tpu.pipeline_mode<synchronous>, transform_indices = @transform_2, window_bounds = array<i64: 4, 128, 128>}, {pipeline_mode = #tpu.pipeline_mode<synchronous>, transform_indices = @transform_3, window_bounds = array<i64: 5, 128>}, {pipeline_mode = #tpu.pipeline_mode<synchronous>, transform_indices = @transform_4, window_bounds = array<i64: 128, 128>}, {pipeline_mode = #tpu.pipeline_mode<synchronous>, transform_indices = @transform_5, window_bounds = array<i64: 1, 128>}, {transform_indices = @transform_6, window_bounds = array<i64: 512, 128>}]} {
    %c0 = arith.constant 0 : index
    %c0_0 = arith.constant 0 : index
    %0 = vector.load %arg1[%c0, %c0_0] : memref<512x32xbf16, #tpu.memory_space<vmem>>, vector<512x32xbf16>
    %c0_1 = arith.constant 0 : index
    %c0_2 = arith.constant 0 : index
    %1 = vector.load %arg4[%c0_1, %c0_2] : memref<5x128xf32, #tpu.memory_space<vmem>>, vector<5x128xf32>
    %c0_3 = arith.constant 0 : index
    %c0_4 = arith.constant 0 : index
    %2 = vector.load %arg2[%c0_3, %c0_4] : memref<32x128xbf16, #tpu.memory_space<vmem>>, vector<32x128xbf16>
    %cst = arith.constant dense<0.000000e+00> : vector<512x128xf32>
    %3 = tpu.matmul %0, %2, %cst {dimension_numbers = #tpu.dot_dimension_numbers<[1], [0], [0], [1], [0, 0, 1, 1], [], []>} : vector<512x32xbf16>, vector<32x128xbf16>, vector<512x128xf32> -> vector<512x128xf32>
    %4 = vector.extract_strided_slice %1 {offsets = [0, 0], sizes = [1, 128], strides = [1, 1]} : vector<5x128xf32> to vector<1x128xf32>
    %5 = vector.broadcast %4 : vector<1x128xf32> to vector<512x128xf32>
    %6 = arith.addf %3, %5 : vector<512x128xf32>
    %cst_5 = arith.constant 0.000000e+00 : f32
    %7 = vector.broadcast %cst_5 : f32 to vector<512x128xf32>
    %8 = arith.maximumf %6, %7 : vector<512x128xf32>
    %9 = arith.truncf %8 : vector<512x128xf32> to vector<512x128xbf16>
    %c0_6 = arith.constant 0 : index
    %c0_7 = arith.constant 0 : index
    %c0_8 = arith.constant 0 : index
    %10 = vector.load %arg3[%c0_6, %c0_7, %c0_8] : memref<4x128x128xbf16, #tpu.memory_space<vmem>>, vector<1x128x128xbf16>
    %11 = vector.shape_cast %10 : vector<1x128x128xbf16> to vector<128x128xbf16>
    %cst_9 = arith.constant dense<0.000000e+00> : vector<512x128xf32>
    %12 = tpu.matmul %9, %11, %cst_9 {dimension_numbers = #tpu.dot_dimension_numbers<[1], [0], [0], [1], [0, 0, 1, 1], [], []>} : vector<512x128xbf16>, vector<128x128xbf16>, vector<512x128xf32> -> vector<512x128xf32>
    %13 = vector.extract_strided_slice %1 {offsets = [1, 0], sizes = [1, 128], strides = [1, 1]} : vector<5x128xf32> to vector<1x128xf32>
    %14 = vector.broadcast %13 : vector<1x128xf32> to vector<512x128xf32>
    %15 = arith.addf %12, %14 : vector<512x128xf32>
    %cst_10 = arith.constant 0.000000e+00 : f32
    %16 = vector.broadcast %cst_10 : f32 to vector<512x128xf32>
    %17 = arith.maximumf %15, %16 : vector<512x128xf32>
    %18 = arith.truncf %17 : vector<512x128xf32> to vector<512x128xbf16>
    %c1 = arith.constant 1 : index
    %c0_11 = arith.constant 0 : index
    %c0_12 = arith.constant 0 : index
    %19 = vector.load %arg3[%c1, %c0_11, %c0_12] : memref<4x128x128xbf16, #tpu.memory_space<vmem>>, vector<1x128x128xbf16>
    %20 = vector.shape_cast %19 : vector<1x128x128xbf16> to vector<128x128xbf16>
    %cst_13 = arith.constant dense<0.000000e+00> : vector<512x128xf32>
    %21 = tpu.matmul %18, %20, %cst_13 {dimension_numbers = #tpu.dot_dimension_numbers<[1], [0], [0], [1], [0, 0, 1, 1], [], []>} : vector<512x128xbf16>, vector<128x128xbf16>, vector<512x128xf32> -> vector<512x128xf32>
    %22 = vector.extract_strided_slice %1 {offsets = [2, 0], sizes = [1, 128], strides = [1, 1]} : vector<5x128xf32> to vector<1x128xf32>
    %23 = vector.broadcast %22 : vector<1x128xf32> to vector<512x128xf32>
    %24 = arith.addf %21, %23 : vector<512x128xf32>
    %25 = arith.addf %24, %8 : vector<512x128xf32>
    %cst_14 = arith.constant 0.000000e+00 : f32
    %26 = vector.broadcast %cst_14 : f32 to vector<512x128xf32>
    %27 = arith.maximumf %25, %26 : vector<512x128xf32>
    %28 = arith.truncf %27 : vector<512x128xf32> to vector<512x128xbf16>
    %c2 = arith.constant 2 : index
    %c0_15 = arith.constant 0 : index
    %c0_16 = arith.constant 0 : index
    %29 = vector.load %arg3[%c2, %c0_15, %c0_16] : memref<4x128x128xbf16, #tpu.memory_space<vmem>>, vector<1x128x128xbf16>
    %30 = vector.shape_cast %29 : vector<1x128x128xbf16> to vector<128x128xbf16>
    %cst_17 = arith.constant dense<0.000000e+00> : vector<512x128xf32>
    %31 = tpu.matmul %28, %30, %cst_17 {dimension_numbers = #tpu.dot_dimension_numbers<[1], [0], [0], [1], [0, 0, 1, 1], [], []>} : vector<512x128xbf16>, vector<128x128xbf16>, vector<512x128xf32> -> vector<512x128xf32>
    %32 = vector.extract_strided_slice %1 {offsets = [3, 0], sizes = [1, 128], strides = [1, 1]} : vector<5x128xf32> to vector<1x128xf32>
    %33 = vector.broadcast %32 : vector<1x128xf32> to vector<512x128xf32>
    %34 = arith.addf %31, %33 : vector<512x128xf32>
    %cst_18 = arith.constant 0.000000e+00 : f32
    %35 = vector.broadcast %cst_18 : f32 to vector<512x128xf32>
    %36 = arith.maximumf %34, %35 : vector<512x128xf32>
    %37 = arith.truncf %36 : vector<512x128xf32> to vector<512x128xbf16>
    %c3 = arith.constant 3 : index
    %c0_19 = arith.constant 0 : index
    %c0_20 = arith.constant 0 : index
    %38 = vector.load %arg3[%c3, %c0_19, %c0_20] : memref<4x128x128xbf16, #tpu.memory_space<vmem>>, vector<1x128x128xbf16>
    %39 = vector.shape_cast %38 : vector<1x128x128xbf16> to vector<128x128xbf16>
    %cst_21 = arith.constant dense<0.000000e+00> : vector<512x128xf32>
    %40 = tpu.matmul %37, %39, %cst_21 {dimension_numbers = #tpu.dot_dimension_numbers<[1], [0], [0], [1], [0, 0, 1, 1], [], []>} : vector<512x128xbf16>, vector<128x128xbf16>, vector<512x128xf32> -> vector<512x128xf32>
    %41 = vector.extract_strided_slice %1 {offsets = [4, 0], sizes = [1, 128], strides = [1, 1]} : vector<5x128xf32> to vector<1x128xf32>
    %42 = vector.broadcast %41 : vector<1x128xf32> to vector<512x128xf32>
    %43 = arith.addf %40, %42 : vector<512x128xf32>
    %44 = arith.addf %43, %27 : vector<512x128xf32>
    %cst_22 = arith.constant 0.000000e+00 : f32
    %45 = vector.broadcast %cst_22 : f32 to vector<512x128xf32>
    %46 = arith.maximumf %44, %45 : vector<512x128xf32>
    %47 = arith.truncf %46 : vector<512x128xf32> to vector<512x128xbf16>
    %c0_23 = arith.constant 0 : index
    %c0_24 = arith.constant 0 : index
    %48 = vector.load %arg5[%c0_23, %c0_24] : memref<128x128xbf16, #tpu.memory_space<vmem>>, vector<128x128xbf16>
    %cst_25 = arith.constant dense<0.000000e+00> : vector<512x128xf32>
    %49 = tpu.matmul %47, %48, %cst_25 {dimension_numbers = #tpu.dot_dimension_numbers<[1], [0], [0], [1], [0, 0, 1, 1], [], []>} : vector<512x128xbf16>, vector<128x128xbf16>, vector<512x128xf32> -> vector<512x128xf32>
    %c0_26 = arith.constant 0 : index
    %c0_27 = arith.constant 0 : index
    %50 = vector.load %arg6[%c0_26, %c0_27] : memref<1x128xf32, #tpu.memory_space<vmem>>, vector<1x128xf32>
    %51 = vector.broadcast %50 : vector<1x128xf32> to vector<512x128xf32>
    %52 = arith.addf %49, %51 : vector<512x128xf32>
    %c0_28 = arith.constant 0 : index
    %c0_29 = arith.constant 0 : index
    %53 = vector.load %arg7[%c0_28, %c0_29] : memref<512x128xf32, #tpu.memory_space<vmem>>, vector<512x128xf32>
    tpu.vector_store %arg7[%c0_28, %c0_29], %52 {strides = array<i32>} : memref<512x128xf32, #tpu.memory_space<vmem>>, vector<512x128xf32>,
    return
  }
  func.func @transform_0(%arg0: i32) -> (i32, i32) {
    %c0_i32 = arith.constant 0 : i32
    %c0_i32_0 = arith.constant 0 : i32
    return %arg0, %c0_i32 : i32, i32
  }
  func.func @transform_1(%arg0: i32) -> (i32, i32) {
    %c0_i32 = arith.constant 0 : i32
    %c0_i32_0 = arith.constant 0 : i32
    %c0_i32_1 = arith.constant 0 : i32
    return %c0_i32, %c0_i32_0 : i32, i32
  }
  func.func @transform_2(%arg0: i32) -> (i32, i32, i32) {
    %c0_i32 = arith.constant 0 : i32
    %c0_i32_0 = arith.constant 0 : i32
    %c0_i32_1 = arith.constant 0 : i32
    %c0_i32_2 = arith.constant 0 : i32
    return %c0_i32, %c0_i32_0, %c0_i32_1 : i32, i32, i32
  }
  func.func @transform_3(%arg0: i32) -> (i32, i32) {
    %c0_i32 = arith.constant 0 : i32
    %c0_i32_0 = arith.constant 0 : i32
    %c0_i32_1 = arith.constant 0 : i32
    return %c0_i32, %c0_i32_0 : i32, i32
  }
  func.func @transform_4(%arg0: i32) -> (i32, i32) {
    %c0_i32 = arith.constant 0 : i32
    %c0_i32_0 = arith.constant 0 : i32
    %c0_i32_1 = arith.constant 0 : i32
    return %c0_i32, %c0_i32_0 : i32, i32
  }
  func.func @transform_5(%arg0: i32) -> (i32, i32) {
    %c0_i32 = arith.constant 0 : i32
    %c0_i32_0 = arith.constant 0 : i32
    %c0_i32_1 = arith.constant 0 : i32
    return %c0_i32, %c0_i32_0 : i32, i32
  }
  func.func @transform_6(%arg0: i32) -> (i32, i32) {
    %c0_i32 = arith.constant 0 : i32
    %c0_i32_0 = arith.constant 0 : i32
    return %arg0, %c0_i32 : i32, i32
  }
}

</mosaic_0001>

<llo_original>
// kernel: residual_mlp_forward.1
$region0: #{residual_mlp_forward.1}
  #allocation0 [shape = 'u32[]', space=smem, size = 0x4, offset = 0x4, fixed_abs, tag = 'smem constant byte address 0x4 - core index']
  #allocation1 [shape = 'u32[144,128]{1,0:T(1,128)}', space=vmem, size = 0x12000, scoped, tag = 'internal scratch']
  %s0 = inlined_call_operand.vmem [shape: bf16[512,32], index: 0, kind: input, shape index: {}]
  %s1 = inlined_call_operand.vmem [shape: bf16[32,128], index: 1, kind: input, shape index: {}]
  %s2 = inlined_call_operand.vmem [shape: bf16[4,128,128], index: 2, kind: input, shape index: {}]
  %s3 = inlined_call_operand.vmem [shape: f32[5,128], index: 3, kind: input, shape index: {}]
  %s4 = inlined_call_operand.vmem [shape: bf16[128,128], index: 4, kind: input, shape index: {}]
  %s5 = inlined_call_operand.vmem [shape: f32[1,128], index: 5, kind: input, shape index: {}]
  %s6 = inlined_call_operand.vmem [shape: f32[512,128], index: 6, kind: output, shape index: {}]
  %s7 = sld [smem:[#allocation0]]
  $region34: #{residual_mlp_forward.1} parent=0
    _
  %s9 = ssub.s32 1, %s7
  %s10 = scalar_select 0, %s9, %s7
  // Predicated region
  $region2: #{residual_mlp_forward.1} parent=0 // pred_check
    _
  $region3: #{residual_mlp_forward.1} parent=0 // pred_check_branch
    %12 = sbr.rel (0) target = $region5
  $region4: #{residual_mlp_forward.1} parent=0 // pred_region
    _
  $region5: #{residual_mlp_forward.1} parent=0 // pred_fallthru
    _
  // Predicated region
  $region6: #{residual_mlp_forward.1} parent=0 // pred_check
    _
  $region7: #{residual_mlp_forward.1} parent=0 // pred_check_branch
    %14 = sbr.rel (0) target = $region9
  $region8: #{residual_mlp_forward.1} parent=0 // pred_region
    _
  $region9: #{residual_mlp_forward.1} parent=0 // pred_fallthru
    _
  // Predicated region
  $region10: #{residual_mlp_forward.1} parent=0 // pred_check
    _
  $region11: #{residual_mlp_forward.1} parent=0 // pred_check_branch
    %16 = sbr.rel (0) target = $region13
  $region12: #{residual_mlp_forward.1} parent=0 // pred_region
    _
  $region13: #{residual_mlp_forward.1} parent=0 // pred_fallthru
    _
  // Predicated region
  $region14: #{residual_mlp_forward.1} parent=0 // pred_check
    _
  $region15: #{residual_mlp_forward.1} parent=0 // pred_check_branch
    %18 = sbr.rel (0) target = $region17
  $region16: #{residual_mlp_forward.1} parent=0 // pred_region
    _
  $region17: #{residual_mlp_forward.1} parent=0 // pred_fallthru
    _
  // Predicated region
  $region18: #{residual_mlp_forward.1} parent=0 // pred_check
    _
  $region19: #{residual_mlp_forward.1} parent=0 // pred_check_branch
    %20 = sbr.rel (0) target = $region21
  $region20: #{residual_mlp_forward.1} parent=0 // pred_region
    _
  $region21: #{residual_mlp_forward.1} parent=0 // pred_fallthru
    _
  // Predicated region
  $region22: #{residual_mlp_forward.1} parent=0 // pred_check
    _
  $region23: #{residual_mlp_forward.1} parent=0 // pred_check_branch
    %22 = sbr.rel (0) target = $region25
  $region24: #{residual_mlp_forward.1} parent=0 // pred_region
    _
  $region25: #{residual_mlp_forward.1} parent=0 // pred_fallthru
    _
  %v24 = vld [vmem:[%s0] sm:$0xf]
  %v25 = vld [vmem:[%s0 + $0x4] sm:$0xf]
  %v26 = vld [vmem:[%s0 + $0x8] sm:$0xf]
  %v27 = vld [vmem:[%s0 + $0xc] sm:$0xf]
  %v28 = vld [vmem:[%s0 + $0x10] sm:$0xf]
  %v29 = vld [vmem:[%s0 + $0x14] sm:$0xf]
  %v30 = vld [vmem:[%s0 + $0x18] sm:$0xf]
  %v31 = vld [vmem:[%s0 + $0x1c] sm:$0xf]
  %v32 = vld [vmem:[%s0 + $0x20] sm:$0xf]
  %v33 = vld [vmem:[%s0 + $0x24] sm:$0xf]
  %v34 = vld [vmem:[%s0 + $0x28] sm:$0xf]
  %v35 = vld [vmem:[%s0 + $0x2c] sm:$0xf]
  %v36 = vld [vmem:[%s0 + $0x30] sm:$0xf]
  %v37 = vld [vmem:[%s0 + $0x34] sm:$0xf]
  %v38 = vld [vmem:[%s0 + $0x38] sm:$0xf]
  %v39 = vld [vmem:[%s0 + $0x3c] sm:$0xf]
  %v40 = vld [vmem:[%s0 + $0x40] sm:$0xf]
  %v41 = vld [vmem:[%s0 + $0x44] sm:$0xf]
  %v42 = vld [vmem:[%s0 + $0x48] sm:$0xf]
  %v43 = vld [vmem:[%s0 + $0x4c] sm:$0xf]
  %v44 = vld [vmem:[%s0 + $0x50] sm:$0xf]
  %v45 = vld [vmem:[%s0 + $0x54] sm:$0xf]
  %v46 = vld [vmem:[%s0 + $0x58] sm:$0xf]
  %v47 = vld [vmem:[%s0 + $0x5c] sm:$0xf]
  %v48 = vld [vmem:[%s0 + $0x60] sm:$0xf]
  %v49 = vld [vmem:[%s0 + $0x64] sm:$0xf]
  %v50 = vld [vmem:[%s0 + $0x68] sm:$0xf]
  %v51 = vld [vmem:[%s0 + $0x6c] sm:$0xf]
  %v52 = vld [vmem:[%s0 + $0x70] sm:$0xf]
  %v53 = vld [vmem:[%s0 + $0x74] sm:$0xf]
  %v54 = vld [vmem:[%s0 + $0x78] sm:$0xf]
  %v55 = vld [vmem:[%s0 + $0x7c] sm:$0xf]
  %v56 = vld [vmem:[%s0 + $0x80] sm:$0xf]
  %v57 = vld [vmem:[%s0 + $0x84] sm:$0xf]
  %v58 = vld [vmem:[%s0 + $0x88] sm:$0xf]
  %v59 = vld [vmem:[%s0 + $0x8c] sm:$0xf]
  %v60 = vld [vmem:[%s0 + $0x90] sm:$0xf]
  %v61 = vld [vmem:[%s0 + $0x94] sm:$0xf]
  %v62 = vld [vmem:[%s0 + $0x98] sm:$0xf]
  %v63 = vld [vmem:[%s0 + $0x9c] sm:$0xf]
  %v64 = vld [vmem:[%s0 + $0xa0] sm:$0xf]
  %v65 = vld [vmem:[%s0 + $0xa4] sm:$0xf]
  %v66 = vld [vmem:[%s0 + $0xa8] sm:$0xf]
  %v67 = vld [vmem:[%s0 + $0xac] sm:$0xf]
  %v68 = vld [vmem:[%s0 + $0xb0] sm:$0xf]
  %v69 = vld [vmem:[%s0 + $0xb4] sm:$0xf]
  %v70 = vld [vmem:[%s0 + $0xb8] sm:$0xf]
  %v71 = vld [vmem:[%s0 + $0xbc] sm:$0xf]
  %v72 = vld [vmem:[%s0 + $0xc0] sm:$0xf]
  %v73 = vld [vmem:[%s0 + $0xc4] sm:$0xf]
  %v74 = vld [vmem:[%s0 + $0xc8] sm:$0xf]
  %v75 = vld [vmem:[%s0 + $0xcc] sm:$0xf]
  %v76 = vld [vmem:[%s0 + $0xd0] sm:$0xf]
  %v77 = vld [vmem:[%s0 + $0xd4] sm:$0xf]
  %v78 = vld [vmem:[%s0 + $0xd8] sm:$0xf]
  %v79 = vld [vmem:[%s0 + $0xdc] sm:$0xf]
  %v80 = vld [vmem:[%s0 + $0xe0] sm:$0xf]
  %v81 = vld [vmem:[%s0 + $0xe4] sm:$0xf]
  %v82 = vld [vmem:[%s0 + $0xe8] sm:$0xf]
  %v83 = vld [vmem:[%s0 + $0xec] sm:$0xf]
  %v84 = vld [vmem:[%s0 + $0xf0] sm:$0xf]
  %v85 = vld [vmem:[%s0 + $0xf4] sm:$0xf]
  %v86 = vld [vmem:[%s0 + $0xf8] sm:$0xf]
  %v87 = vld [vmem:[%s0 + $0xfc] sm:$0xf]
  %v88 = vld [vmem:[%s3] sm:$0x1f]
  %v89 = vld [vmem:[%s1] sm:$0xf]
  %v90 = vld [vmem:[%s1 + $0x4] sm:$0xf]
  %v91 = vld [vmem:[%s1 + $0x8] sm:$0xf]
  %v92 = vld [vmem:[%s1 + $0xc] sm:$0xf]
  %v93 = vlaneseq
  %v94 = vshrl.u32 %v93, 7
  %v95 = vsub.s32 0, %v94
  %v96 = vrot.slane %v88, %v95
  %v161 = vunpack.c.l.b16 %v24
  %v162 = vunpack.c.l.b16 %v25
  %v163 = vunpack.c.l.b16 %v26
  %v164 = vunpack.c.l.b16 %v27
  %v165 = vunpack.c.l.b16 %v28
  %v166 = vunpack.c.l.b16 %v29
  %v167 = vunpack.c.l.b16 %v30
  %v168 = vunpack.c.l.b16 %v31
  %v169 = vunpack.c.l.b16 %v32
  %v170 = vunpack.c.l.b16 %v33
  %v171 = vunpack.c.l.b16 %v34
  %v172 = vunpack.c.l.b16 %v35
  %v173 = vunpack.c.l.b16 %v36
  %v174 = vunpack.c.l.b16 %v37
  %v175 = vunpack.c.l.b16 %v38
  %v176 = vunpack.c.l.b16 %v39
  %v177 = vunpack.c.l.b16 %v40
  %v178 = vunpack.c.l.b16 %v41
  %v179 = vunpack.c.l.b16 %v42
  %v180 = vunpack.c.l.b16 %v43
  %v181 = vunpack.c.l.b16 %v44
  %v182 = vunpack.c.l.b16 %v45
  %v183 = vunpack.c.l.b16 %v46
  %v184 = vunpack.c.l.b16 %v47
  %v185 = vunpack.c.l.b16 %v48
  %v186 = vunpack.c.l.b16 %v49
  %v187 = vunpack.c.l.b16 %v50
  %v188 = vunpack.c.l.b16 %v51
  %v189 = vunpack.c.l.b16 %v52
  %v190 = vunpack.c.l.b16 %v53
  %v191 = vunpack.c.l.b16 %v54
  %v192 = vunpack.c.l.b16 %v55
  %v193 = vunpack.c.l.b16 %v56
  %v194 = vunpack.c.l.b16 %v57
  %v195 = vunpack.c.l.b16 %v58
  %v196 = vunpack.c.l.b16 %v59
  %v197 = vunpack.c.l.b16 %v60
  %v198 = vunpack.c.l.b16 %v61
  %v199 = vunpack.c.l.b16 %v62
  %v200 = vunpack.c.l.b16 %v63
  %v201 = vunpack.c.l.b16 %v64
  %v202 = vunpack.c.l.b16 %v65
  %v203 = vunpack.c.l.b16 %v66
  %v204 = vunpack.c.l.b16 %v67
  %v205 = vunpack.c.l.b16 %v68
  %v206 = vunpack.c.l.b16 %v69
  %v207 = vunpack.c.l.b16 %v70
  %v208 = vunpack.c.l.b16 %v71
  %v209 = vunpack.c.l.b16 %v72
  %v210 = vunpack.c.l.b16 %v73
  %v211 = vunpack.c.l.b16 %v74
  %v212 = vunpack.c.l.b16 %v75
  %v213 = vunpack.c.l.b16 %v76
  %v214 = vunpack.c.l.b16 %v77
  %v215 = vunpack.c.l.b16 %v78
  %v216 = vunpack.c.l.b16 %v79
  %v217 = vunpack.c.l.b16 %v80
  %v218 = vunpack.c.l.b16 %v81
  %v219 = vunpack.c.l.b16 %v82
  %v220 = vunpack.c.l.b16 %v83
  %v221 = vunpack.c.l.b16 %v84
  %v222 = vunpack.c.l.b16 %v85
  %v223 = vunpack.c.l.b16 %v86
  %v224 = vunpack.c.l.b16 %v87
  %v225 = vpack.c.b16 %v162, %v161
  %v226 = vpack.c.b16 %v164, %v163
  %v227 = vpack.c.b16 %v166, %v165
  %v228 = vpack.c.b16 %v168, %v167
  %v229 = vpack.c.b16 %v170, %v169
  %v230 = vpack.c.b16 %v172, %v171
  %v231 = vpack.c.b16 %v174, %v173
  %v232 = vpack.c.b16 %v176, %v175
  %v233 = vpack.c.b16 %v178, %v177
  %v234 = vpack.c.b16 %v180, %v179
  %v235 = vpack.c.b16 %v182, %v181
  %v236 = vpack.c.b16 %v184, %v183
  %v237 = vpack.c.b16 %v186, %v185
  %v238 = vpack.c.b16 %v188, %v187
  %v239 = vpack.c.b16 %v190, %v189
  %v240 = vpack.c.b16 %v192, %v191
  %v241 = vpack.c.b16 %v194, %v193
  %v242 = vpack.c.b16 %v196, %v195
  %v243 = vpack.c.b16 %v198, %v197
  %v244 = vpack.c.b16 %v200, %v199
  %v245 = vpack.c.b16 %v202, %v201
  %v246 = vpack.c.b16 %v204, %v203
  %v247 = vpack.c.b16 %v206, %v205
  %v248 = vpack.c.b16 %v208, %v207
  %v249 = vpack.c.b16 %v210, %v209
  %v250 = vpack.c.b16 %v212, %v211
  %v251 = vpack.c.b16 %v214, %v213
  %v252 = vpack.c.b16 %v216, %v215
  %v253 = vpack.c.b16 %v218, %v217
  %v254 = vpack.c.b16 %v220, %v219
  %v255 = vpack.c.b16 %v222, %v221
  %v256 = vpack.c.b16 %v224, %v223
  %v261 = vunpack.c.l.b16 %v89
  %v262 = vunpack.c.l.b16 %v90
  %v263 = vunpack.c.l.b16 %v91
  %v264 = vunpack.c.l.b16 %v92
  %v265 = vpack.c.b16 %v262, %v261
  %v266 = vpack.c.b16 %v264, %v263
  %vm269 = vcmask 261120
  %v271 = vsel %vm269, %v225, 0
  %v274 = vsel %vm269, %v226, 0
  %v277 = vsel %vm269, %v227, 0
  %v280 = vsel %vm269, %v228, 0
  %v283 = vsel %vm269, %v229, 0
  %v286 = vsel %vm269, %v230, 0
  %v289 = vsel %vm269, %v231, 0
  %v292 = vsel %vm269, %v232, 0
  %v295 = vsel %vm269, %v233, 0
  %v298 = vsel %vm269, %v234, 0
  %v301 = vsel %vm269, %v235, 0
  %v304 = vsel %vm269, %v236, 0
  %v307 = vsel %vm269, %v237, 0
  %v310 = vsel %vm269, %v238, 0
  %v313 = vsel %vm269, %v239, 0
  %v316 = vsel %vm269, %v240, 0
  %v319 = vsel %vm269, %v241, 0
  %v322 = vsel %vm269, %v242, 0
  %v325 = vsel %vm269, %v243, 0
  %v328 = vsel %vm269, %v244, 0
  %v331 = vsel %vm269, %v245, 0
  %v334 = vsel %vm269, %v246, 0
  %v337 = vsel %vm269, %v247, 0
  %v340 = vsel %vm269, %v248, 0
  %v343 = vsel %vm269, %v249, 0
  %v346 = vsel %vm269, %v250, 0
  %v349 = vsel %vm269, %v251, 0
  %v352 = vsel %vm269, %v252, 0
  %v355 = vsel %vm269, %v253, 0
  %v358 = vsel %vm269, %v254, 0
  %v361 = vsel %vm269, %v255, 0
  %v364 = vsel %vm269, %v256, 0
  %366 = vmatprep.subr.bf16.mxu0 0
  %367 = vmatpush1.bf16.msra.mxu0 0
  %368 = vmatprep.subr.bf16.mxu0 0
  %369 = vmatpush1.bf16.msra.mxu0 0
  %370 = vmatprep.subr.bf16.mxu0 0
  %371 = vmatpush1.bf16.msra.mxu0 0
  %372 = vmatprep.subr.bf16.mxu0 0
  %373 = vmatpush1.bf16.msra.mxu0 0
  %374 = vmatprep.subr.bf16.mxu0 0
  %375 = vmatpush1.bf16.msra.mxu0 0
  %376 = vmatprep.subr.bf16.mxu0 0
  %377 = vmatpush1.bf16.msra.mxu0 0
  %378 = vmatprep.subr.bf16.mxu0 0
  %379 = vmatpush1.bf16.msra.mxu0 %v266
  %380 = vmatprep.subr.bf16.mxu0 0
  %381 = vmatpush1.bf16.msra.mxu0 %v265
  %382 = vmatprep.subr.bf16.mxu0 0
  %383 = vmatpush2.bf16.msra.mxu0 0
  %384 = vmatprep.subr.bf16.mxu0 0
  %385 = vmatpush2.bf16.msra.mxu0 0
  %386 = vmatprep.subr.bf16.mxu0 0
  %387 = vmatpush2.bf16.msra.mxu0 0
  %388 = vmatprep.subr.bf16.mxu0 0
  %389 = vmatpush2.bf16.msra.mxu0 0
  %390 = vmatprep.subr.bf16.mxu0 0
  %391 = vmatpush2.bf16.msra.mxu0 0
  %392 = vmatprep.subr.bf16.mxu0 0
  %393 = vmatpush2.bf16.msra.mxu0 0
  %394 = vmatprep.subr.bf16.mxu0 0
  %395 = vmatpush2.bf16.msra.mxu0 0
  %396 = vmatprep.subr.bf16.mxu0 0
  %397 = vmatpush2.bf16.msra.mxu0 0
  %398 = vmatprep.mubr.bf16.mxu0 0
  %399 = vmatmul.mubr.bf16.gmra.mxu0 %v271
  %v400 = vpop.f32.mrf.mxu0
  %v401 = vadd.f32 %v96, %v400
  %v402 = vpop.f32.mrf.mxu0
  %v403 = vpop.f32.mrf.mxu0
  %v404 = vadd.f32 %v96, %v403
  %v405 = vpop.f32.mrf.mxu0
  %406 = vmatprep.mubr.bf16.mxu0 0
  %407 = vmatmul.mubr.bf16.gmra.mxu0 %v274
  %v408 = vpop.f32.mrf.mxu0
  %v409 = vadd.f32 %v96, %v408
  %v410 = vpop.f32.mrf.mxu0
  %v411 = vpop.f32.mrf.mxu0
  %v412 = vadd.f32 %v96, %v411
  %v413 = vpop.f32.mrf.mxu0
  %414 = vmatprep.mubr.bf16.mxu0 0
  %415 = vmatmul.mubr.bf16.gmra.mxu0 %v277
  %v416 = vpop.f32.mrf.mxu0
  %v417 = vadd.f32 %v96, %v416
  %v418 = vpop.f32.mrf.mxu0
  %v419 = vpop.f32.mrf.mxu0
  %v420 = vadd.f32 %v96, %v419
  %v421 = vpop.f32.mrf.mxu0
  %422 = vmatprep.mubr.bf16.mxu0 0
  %423 = vmatmul.mubr.bf16.gmra.mxu0 %v280
  %v424 = vpop.f32.mrf.mxu0
  %v425 = vadd.f32 %v96, %v424
  %v426 = vpop.f32.mrf.mxu0
  %v427 = vpop.f32.mrf.mxu0
  %v428 = vadd.f32 %v96, %v427
  %v429 = vpop.f32.mrf.mxu0
  %430 = vmatprep.mubr.bf16.mxu0 0
  %431 = vmatmul.mubr.bf16.gmra.mxu0 %v283
  %v432 = vpop.f32.mrf.mxu0
  %v433 = vadd.f32 %v96, %v432
  %v434 = vpop.f32.mrf.mxu0
  %v435 = vpop.f32.mrf.mxu0
  %v436 = vadd.f32 %v96, %v435
  %v437 = vpop.f32.mrf.mxu0
  %438 = vmatprep.mubr.bf16.mxu0 0
  %439 = vmatmul.mubr.bf16.gmra.mxu0 %v286
  %v440 = vpop.f32.mrf.mxu0
  %v441 = vadd.f32 %v96, %v440
  %v442 = vpop.f32.mrf.mxu0
  %v443 = vpop.f32.mrf.mxu0
  %v444 = vadd.f32 %v96, %v443
  %v445 = vpop.f32.mrf.mxu0
  %446 = vmatprep.mubr.bf16.mxu0 0
  %447 = vmatmul.mubr.bf16.gmra.mxu0 %v289
  %v448 = vpop.f32.mrf.mxu0
  %v449 = vadd.f32 %v96, %v448
  %v450 = vpop.f32.mrf.mxu0
  %v451 = vpop.f32.mrf.mxu0
  %v452 = vadd.f32 %v96, %v451
  %v453 = vpop.f32.mrf.mxu0
  %454 = vmatprep.mubr.bf16.mxu0 0
  %455 = vmatmul.mubr.bf16.gmra.mxu0 %v292
  %v456 = vpop.f32.mrf.mxu0
  %v457 = vadd.f32 %v96, %v456
  %v458 = vpop.f32.mrf.mxu0
  %v459 = vpop.f32.mrf.mxu0
  %v460 = vadd.f32 %v96, %v459
  %v461 = vpop.f32.mrf.mxu0
  %462 = vmatprep.mubr.bf16.mxu0 0
  %463 = vmatmul.mubr.bf16.gmra.mxu0 %v295
  %v464 = vpop.f32.mrf.mxu0
  %v465 = vadd.f32 %v96, %v464
  %v466 = vpop.f32.mrf.mxu0
  %v467 = vpop.f32.mrf.mxu0
  %v468 = vadd.f32 %v96, %v467
  %v469 = vpop.f32.mrf.mxu0
  %470 = vmatprep.mubr.bf16.mxu0 0
  %471 = vmatmul.mubr.bf16.gmra.mxu0 %v298
  %v472 = vpop.f32.mrf.mxu0
  %v473 = vadd.f32 %v96, %v472
  %v474 = vpop.f32.mrf.mxu0
  %v475 = vpop.f32.mrf.mxu0
  %v476 = vadd.f32 %v96, %v475
  %v477 = vpop.f32.mrf.mxu0
  %478 = vmatprep.mubr.bf16.mxu0 0
  %479 = vmatmul.mubr.bf16.gmra.mxu0 %v301
  %v480 = vpop.f32.mrf.mxu0
  %v481 = vadd.f32 %v96, %v480
  %v482 = vpop.f32.mrf.mxu0
  %v483 = vpop.f32.mrf.mxu0
  %v484 = vadd.f32 %v96, %v483
  %v485 = vpop.f32.mrf.mxu0
  %486 = vmatprep.mubr.bf16.mxu0 0
  %487 = vmatmul.mubr.bf16.gmra.mxu0 %v304
  %v488 = vpop.f32.mrf.mxu0
  %v489 = vadd.f32 %v96, %v488
  %v490 = vpop.f32.mrf.mxu0
  %v491 = vpop.f32.mrf.mxu0
  %v492 = vadd.f32 %v96, %v491
  %v493 = vpop.f32.mrf.mxu0
  %494 = vmatprep.mubr.bf16.mxu0 0
  %495 = vmatmul.mubr.bf16.gmra.mxu0 %v307
  %v496 = vpop.f32.mrf.mxu0
  %v497 = vadd.f32 %v96, %v496
  %v498 = vpop.f32.mrf.mxu0
  %v499 = vpop.f32.mrf.mxu0
  %v500 = vadd.f32 %v96, %v499
  %v501 = vpop.f32.mrf.mxu0
  %502 = vmatprep.mubr.bf16.mxu0 0
  %503 = vmatmul.mubr.bf16.gmra.mxu0 %v310
  %v504 = vpop.f32.mrf.mxu0
  %v505 = vadd.f32 %v96, %v504
  %v506 = vpop.f32.mrf.mxu0
  %v507 = vpop.f32.mrf.mxu0
  %v508 = vadd.f32 %v96, %v507
  %v509 = vpop.f32.mrf.mxu0
  %510 = vmatprep.mubr.bf16.mxu0 0
  %511 = vmatmul.mubr.bf16.gmra.mxu0 %v313
  %v512 = vpop.f32.mrf.mxu0
  %v513 = vadd.f32 %v96, %v512
  %v514 = vpop.f32.mrf.mxu0
  %v515 = vpop.f32.mrf.mxu0
  %v516 = vadd.f32 %v96, %v515
  %v517 = vpop.f32.mrf.mxu0
  %518 = vmatprep.mubr.bf16.mxu0 0
  %519 = vmatmul.mubr.bf16.gmra.mxu0 %v316
  %v520 = vpop.f32.mrf.mxu0
  %v521 = vadd.f32 %v96, %v520
  %v522 = vpop.f32.mrf.mxu0
  %v523 = vpop.f32.mrf.mxu0
  %v524 = vadd.f32 %v96, %v523
  %v525 = vpop.f32.mrf.mxu0
  %526 = vmatprep.mubr.bf16.mxu0 0
  %527 = vmatmul.mubr.bf16.gmra.mxu0 %v319
  %v528 = vpop.f32.mrf.mxu0
  %v529 = vadd.f32 %v96, %v528
  %v530 = vpop.f32.mrf.mxu0
  %v531 = vpop.f32.mrf.mxu0
  %v532 = vadd.f32 %v96, %v531
  %v533 = vpop.f32.mrf.mxu0
  %534 = vmatprep.mubr.bf16.mxu0 0
  %535 = vmatmul.mubr.bf16.gmra.mxu0 %v322
  %v536 = vpop.f32.mrf.mxu0
  %v537 = vadd.f32 %v96, %v536
  %v538 = vpop.f32.mrf.mxu0
  %v539 = vpop.f32.mrf.mxu0
  %v540 = vadd.f32 %v96, %v539
  %v541 = vpop.f32.mrf.mxu0
  %542 = vmatprep.mubr.bf16.mxu0 0
  %543 = vmatmul.mubr.bf16.gmra.mxu0 %v325
  %v544 = vpop.f32.mrf.mxu0
  %v545 = vadd.f32 %v96, %v544
  %v546 = vpop.f32.mrf.mxu0
  %v547 = vpop.f32.mrf.mxu0
  %v548 = vadd.f32 %v96, %v547
  %v549 = vpop.f32.mrf.mxu0
  %550 = vmatprep.mubr.bf16.mxu0 0
  %551 = vmatmul.mubr.bf16.gmra.mxu0 %v328
  %v552 = vpop.f32.mrf.mxu0
  %v553 = vadd.f32 %v96, %v552
  %v554 = vpop.f32.mrf.mxu0
  %v555 = vpop.f32.mrf.mxu0
  %v556 = vadd.f32 %v96, %v555
  %v557 = vpop.f32.mrf.mxu0
  %558 = vmatprep.mubr.bf16.mxu0 0
  %559 = vmatmul.mubr.bf16.gmra.mxu0 %v331
  %v560 = vpop.f32.mrf.mxu0
  %v561 = vadd.f32 %v96, %v560
  %v562 = vpop.f32.mrf.mxu0
  %v563 = vpop.f32.mrf.mxu0
  %v564 = vadd.f32 %v96, %v563
  %v565 = vpop.f32.mrf.mxu0
  %566 = vmatprep.mubr.bf16.mxu0 0
  %567 = vmatmul.mubr.bf16.gmra.mxu0 %v334
  %v568 = vpop.f32.mrf.mxu0
  %v569 = vadd.f32 %v96, %v568
  %v570 = vpop.f32.mrf.mxu0
  %v571 = vpop.f32.mrf.mxu0
  %v572 = vadd.f32 %v96, %v571
  %v573 = vpop.f32.mrf.mxu0
  %574 = vmatprep.mubr.bf16.mxu0 0
  %575 = vmatmul.mubr.bf16.gmra.mxu0 %v337
  %v576 = vpop.f32.mrf.mxu0
  %v577 = vadd.f32 %v96, %v576
  %v578 = vpop.f32.mrf.mxu0
  %v579 = vpop.f32.mrf.mxu0
  %v580 = vadd.f32 %v96, %v579
  %v581 = vpop.f32.mrf.mxu0
  %582 = vmatprep.mubr.bf16.mxu0 0
  %583 = vmatmul.mubr.bf16.gmra.mxu0 %v340
  %v584 = vpop.f32.mrf.mxu0
  %v585 = vadd.f32 %v96, %v584
  %v586 = vpop.f32.mrf.mxu0
  %v587 = vpop.f32.mrf.mxu0
  %v588 = vadd.f32 %v96, %v587
  %v589 = vpop.f32.mrf.mxu0
  %590 = vmatprep.mubr.bf16.mxu0 0
  %591 = vmatmul.mubr.bf16.gmra.mxu0 %v343
  %v592 = vpop.f32.mrf.mxu0
  %v593 = vadd.f32 %v96, %v592
  %v594 = vpop.f32.mrf.mxu0
  %v595 = vpop.f32.mrf.mxu0
  %v596 = vadd.f32 %v96, %v595
  %v597 = vpop.f32.mrf.mxu0
  %598 = vmatprep.mubr.bf16.mxu0 0
  %599 = vmatmul.mubr.bf16.gmra.mxu0 %v346
  %v600 = vpop.f32.mrf.mxu0
  %v601 = vadd.f32 %v96, %v600
  %v602 = vpop.f32.mrf.mxu0
  %v603 = vpop.f32.mrf.mxu0
  %v604 = vadd.f32 %v96, %v603
  %v605 = vpop.f32.mrf.mxu0
  %606 = vmatprep.mubr.bf16.mxu0 0
  %607 = vmatmul.mubr.bf16.gmra.mxu0 %v349
  %v608 = vpop.f32.mrf.mxu0
  %v609 = vadd.f32 %v96, %v608
  %v610 = vpop.f32.mrf.mxu0
  %v611 = vpop.f32.mrf.mxu0
  %v612 = vadd.f32 %v96, %v611
  %v613 = vpop.f32.mrf.mxu0
  %614 = vmatprep.mubr.bf16.mxu0 0
  %615 = vmatmul.mubr.bf16.gmra.mxu0 %v352
  %v616 = vpop.f32.mrf.mxu0
  %v617 = vadd.f32 %v96, %v616
  %v618 = vpop.f32.mrf.mxu0
  %v619 = vpop.f32.mrf.mxu0
  %v620 = vadd.f32 %v96, %v619
  %v621 = vpop.f32.mrf.mxu0
  %622 = vmatprep.mubr.bf16.mxu0 0
  %623 = vmatmul.mubr.bf16.gmra.mxu0 %v355
  %v624 = vpop.f32.mrf.mxu0
  %v625 = vadd.f32 %v96, %v624
  %v626 = vpop.f32.mrf.mxu0
  %v627 = vpop.f32.mrf.mxu0
  %v628 = vadd.f32 %v96, %v627
  %v629 = vpop.f32.mrf.mxu0
  %630 = vmatprep.mubr.bf16.mxu0 0
  %631 = vmatmul.mubr.bf16.gmra.mxu0 %v358
  %v632 = vpop.f32.mrf.mxu0
  %v633 = vadd.f32 %v96, %v632
  %v634 = vpop.f32.mrf.mxu0
  %v635 = vpop.f32.mrf.mxu0
  %v636 = vadd.f32 %v96, %v635
  %v637 = vpop.f32.mrf.mxu0
  %638 = vmatprep.mubr.bf16.mxu0 0
  %639 = vmatmul.mubr.bf16.gmra.mxu0 %v361
  %v640 = vpop.f32.mrf.mxu0
  %v641 = vadd.f32 %v96, %v640
  %v642 = vpop.f32.mrf.mxu0
  %v643 = vpop.f32.mrf.mxu0
  %v644 = vadd.f32 %v96, %v643
  %v645 = vpop.f32.mrf.mxu0
  %646 = vmatprep.mubr.bf16.mxu0 0
  %647 = vmatmul.mubr.bf16.gmra.mxu0 %v364
  %v648 = vpop.f32.mrf.mxu0
  %v649 = vadd.f32 %v96, %v648
  %v650 = vpop.f32.mrf.mxu0
  %v651 = vpop.f32.mrf.mxu0
  %v652 = vadd.f32 %v96, %v651
  %v653 = vpop.f32.mrf.mxu0
  %654 = vdwg.mxu0
  %v655 = vmax.f32 %v401, 0.0
  %v656 = vmax.f32 %v404, 0.0
  %v657 = vmax.f32 %v409, 0.0
  %v658 = vmax.f32 %v412, 0.0
  %v659 = vmax.f32 %v417, 0.0
  %v660 = vmax.f32 %v420, 0.0
  %v661 = vmax.f32 %v425, 0.0
  %v662 = vmax.f32 %v428, 0.0
  %v663 = vmax.f32 %v433, 0.0
  %v664 = vmax.f32 %v436, 0.0
  %v665 = vmax.f32 %v441, 0.0
  %v666 = vmax.f32 %v444, 0.0
  %v667 = vmax.f32 %v449, 0.0
  %v668 = vmax.f32 %v452, 0.0
  %v669 = vmax.f32 %v457, 0.0
  %v670 = vmax.f32 %v460, 0.0
  %v671 = vmax.f32 %v465, 0.0
  %v672 = vmax.f32 %v468, 0.0
  %v673 = vmax.f32 %v473, 0.0
  %v674 = vmax.f32 %v476, 0.0
  %v675 = vmax.f32 %v481, 0.0
  %v676 = vmax.f32 %v484, 0.0
  %v677 = vmax.f32 %v489, 0.0
  %v678 = vmax.f32 %v492, 0.0
  %v679 = vmax.f32 %v497, 0.0
  %v680 = vmax.f32 %v500, 0.0
  %v681 = vmax.f32 %v505, 0.0
  %v682 = vmax.f32 %v508, 0.0
  %v683 = vmax.f32 %v513, 0.0
  %v684 = vmax.f32 %v516, 0.0
  %v685 = vmax.f32 %v521, 0.0
  %v686 = vmax.f32 %v524, 0.0
  %v687 = vmax.f32 %v529, 0.0
  %v688 = vmax.f32 %v532, 0.0
  %v689 = vmax.f32 %v537, 0.0
  %v690 = vmax.f32 %v540, 0.0
  %v691 = vmax.f32 %v545, 0.0
  %v692 = vmax.f32 %v548, 0.0
  %v693 = vmax.f32 %v553, 0.0
  %v694 = vmax.f32 %v556, 0.0
  %v695 = vmax.f32 %v561, 0.0
  %v696 = vmax.f32 %v564, 0.0
  %v697 = vmax.f32 %v569, 0.0
  %v698 = vmax.f32 %v572, 0.0
  %v699 = vmax.f32 %v577, 0.0
  %v700 = vmax.f32 %v580, 0.0
  %v701 = vmax.f32 %v585, 0.0
  %v702 = vmax.f32 %v588, 0.0
  %v703 = vmax.f32 %v593, 0.0
  %v704 = vmax.f32 %v596, 0.0
  %v705 = vmax.f32 %v601, 0.0
  %v706 = vmax.f32 %v604, 0.0
  %v707 = vmax.f32 %v609, 0.0
  %v708 = vmax.f32 %v612, 0.0
  %v709 = vmax.f32 %v617, 0.0
  %v710 = vmax.f32 %v620, 0.0
  %v711 = vmax.f32 %v625, 0.0
  %v712 = vmax.f32 %v628, 0.0
  %v713 = vmax.f32 %v633, 0.0
  %v714 = vmax.f32 %v636, 0.0
  %v715 = vmax.f32 %v641, 0.0
  %v716 = vmax.f32 %v644, 0.0
  %v717 = vmax.f32 %v649, 0.0
  %v718 = vmax.f32 %v652, 0.0
  %v719 = vpack.c.bf16 %v656, %v655
  %v720 = vpack.c.bf16 %v658, %v657
  %v721 = vpack.c.bf16 %v660, %v659
  %v722 = vpack.c.bf16 %v662, %v661
  %v723 = vpack.c.bf16 %v664, %v663
  %v724 = vpack.c.bf16 %v666, %v665
  %v725 = vpack.c.bf16 %v668, %v667
  %v726 = vpack.c.bf16 %v670, %v669
  %v727 = vpack.c.bf16 %v672, %v671
  %v728 = vpack.c.bf16 %v674, %v673
  %v729 = vpack.c.bf16 %v676, %v675
  %v730 = vpack.c.bf16 %v678, %v677
  %v731 = vpack.c.bf16 %v680, %v679
  %v732 = vpack.c.bf16 %v682, %v681
  %v733 = vpack.c.bf16 %v684, %v683
  %v734 = vpack.c.bf16 %v686, %v685
  %v735 = vpack.c.bf16 %v688, %v687
  %v736 = vpack.c.bf16 %v690, %v689
  %v737 = vpack.c.bf16 %v692, %v691
  %v738 = vpack.c.bf16 %v694, %v693
  %v739 = vpack.c.bf16 %v696, %v695
  %v740 = vpack.c.bf16 %v698, %v697
  %v741 = vpack.c.bf16 %v700, %v699
  %v742 = vpack.c.bf16 %v702, %v701
  %v743 = vpack.c.bf16 %v704, %v703
  %v744 = vpack.c.bf16 %v706, %v705
  %v745 = vpack.c.bf16 %v708, %v707
  %v746 = vpack.c.bf16 %v710, %v709
  %v747 = vpack.c.bf16 %v712, %v711
  %v748 = vpack.c.bf16 %v714, %v713
  %v749 = vpack.c.bf16 %v716, %v715
  %v750 = vpack.c.bf16 %v718, %v717
  %v751 = vld [vmem:[%s2] sm:$0xf]
  %v752 = vld [vmem:[%s2 + $0x4] sm:$0xf]
  %v753 = vld [vmem:[%s2 + $0x8] sm:$0xf]
  %v754 = vld [vmem:[%s2 + $0xc] sm:$0xf]
  %v755 = vld [vmem:[%s2 + $0x10] sm:$0xf]
  %v756 = vld [vmem:[%s2 + $0x14] sm:$0xf]
  %v757 = vld [vmem:[%s2 + $0x18] sm:$0xf]
  %v758 = vld [vmem:[%s2 + $0x1c] sm:$0xf]
  %v759 = vld [vmem:[%s2 + $0x20] sm:$0xf]
  %v760 = vld [vmem:[%s2 + $0x24] sm:$0xf]
  %v761 = vld [vmem:[%s2 + $0x28] sm:$0xf]
  %v762 = vld [vmem:[%s2 + $0x2c] sm:$0xf]
  %v763 = vld [vmem:[%s2 + $0x30] sm:$0xf]
  %v764 = vld [vmem:[%s2 + $0x34] sm:$0xf]
  %v765 = vld [vmem:[%s2 + $0x38] sm:$0xf]
  %v766 = vld [vmem:[%s2 + $0x3c] sm:$0xf]
  %v767 = vlaneseq
  %v768 = vshrl.u32 %v767, 7
  %v769 = vsub.s32 1, %v768
  %v770 = vrot.slane %v88, %v769
  %v787 = vunpack.c.l.b16 %v751
  %v788 = vunpack.c.l.b16 %v752
  %v789 = vunpack.c.l.b16 %v753
  %v790 = vunpack.c.l.b16 %v754
  %v791 = vunpack.c.l.b16 %v755
  %v792 = vunpack.c.l.b16 %v756
  %v793 = vunpack.c.l.b16 %v757
  %v794 = vunpack.c.l.b16 %v758
  %v795 = vunpack.c.l.b16 %v759
  %v796 = vunpack.c.l.b16 %v760
  %v797 = vunpack.c.l.b16 %v761
  %v798 = vunpack.c.l.b16 %v762
  %v799 = vunpack.c.l.b16 %v763
  %v800 = vunpack.c.l.b16 %v764
  %v801 = vunpack.c.l.b16 %v765
  %v802 = vunpack.c.l.b16 %v766
  %v803 = vpack.c.b16 %v788, %v787
  %v804 = vpack.c.b16 %v790, %v789
  %v805 = vpack.c.b16 %v792, %v791
  %v806 = vpack.c.b16 %v794, %v793
  %v807 = vpack.c.b16 %v796, %v795
  %v808 = vpack.c.b16 %v798, %v797
  %v809 = vpack.c.b16 %v800, %v799
  %v810 = vpack.c.b16 %v802, %v801
  %819 = vmatprep.subr.bf16.mxu0 0
  %820 = vmatpush1.bf16.msra.mxu0 %v810
  %821 = vmatprep.subr.bf16.mxu0 0
  %822 = vmatpush1.bf16.msra.mxu0 %v809
  %823 = vmatprep.subr.bf16.mxu0 0
  %824 = vmatpush1.bf16.msra.mxu0 %v808
  %825 = vmatprep.subr.bf16.mxu0 0
  %826 = vmatpush1.bf16.msra.mxu0 %v807
  %827 = vmatprep.subr.bf16.mxu0 0
  %828 = vmatpush1.bf16.msra.mxu0 %v806
  %829 = vmatprep.subr.bf16.mxu0 0
  %830 = vmatpush1.bf16.msra.mxu0 %v805
  %831 = vmatprep.subr.bf16.mxu0 0
  %832 = vmatpush1.bf16.msra.mxu0 %v804
  %833 = vmatprep.subr.bf16.mxu0 0
  %834 = vmatpush1.bf16.msra.mxu0 %v803
  %835 = vmatprep.subr.bf16.mxu0 0
  %836 = vmatpush2.bf16.msra.mxu0 0
  %837 = vmatprep.subr.bf16.mxu0 0
  %838 = vmatpush2.bf16.msra.mxu0 0
  %839 = vmatprep.subr.bf16.mxu0 0
  %840 = vmatpush2.bf16.msra.mxu0 0
  %841 = vmatprep.subr.bf16.mxu0 0
  %842 = vmatpush2.bf16.msra.mxu0 0
  %843 = vmatprep.subr.bf16.mxu0 0
  %844 = vmatpush2.bf16.msra.mxu0 0
  %845 = vmatprep.subr.bf16.mxu0 0
  %846 = vmatpush2.bf16.msra.mxu0 0
  %847 = vmatprep.subr.bf16.mxu0 0
  %848 = vmatpush2.bf16.msra.mxu0 0
  %849 = vmatprep.subr.bf16.mxu0 0
  %850 = vmatpush2.bf16.msra.mxu0 0
  %851 = vmatprep.mubr.bf16.mxu0 0
  %852 = vmatmul.mubr.bf16.gmra.mxu0 %v719
  %v853 = vpop.f32.mrf.mxu0
  %v854 = vadd.f32 %v770, %v853
  %v855 = vpop.f32.mrf.mxu0
  %v856 = vpop.f32.mrf.mxu0
  %v857 = vadd.f32 %v770, %v856
  %v858 = vpop.f32.mrf.mxu0
  %859 = vmatprep.mubr.bf16.mxu0 0
  %860 = vmatmul.mubr.bf16.gmra.mxu0 %v720
  %v861 = vpop.f32.mrf.mxu0
  %v862 = vadd.f32 %v770, %v861
  %v863 = vpop.f32.mrf.mxu0
  %v864 = vpop.f32.mrf.mxu0
  %v865 = vadd.f32 %v770, %v864
  %v866 = vpop.f32.mrf.mxu0
  %867 = vmatprep.mubr.bf16.mxu0 0
  %868 = vmatmul.mubr.bf16.gmra.mxu0 %v721
  %v869 = vpop.f32.mrf.mxu0
  %v870 = vadd.f32 %v770, %v869
  %v871 = vpop.f32.mrf.mxu0
  %v872 = vpop.f32.mrf.mxu0
  %v873 = vadd.f32 %v770, %v872
  %v874 = vpop.f32.mrf.mxu0
  %875 = vmatprep.mubr.bf16.mxu0 0
  %876 = vmatmul.mubr.bf16.gmra.mxu0 %v722
  %v877 = vpop.f32.mrf.mxu0
  %v878 = vadd.f32 %v770, %v877
  %v879 = vpop.f32.mrf.mxu0
  %v880 = vpop.f32.mrf.mxu0
  %v881 = vadd.f32 %v770, %v880
  %v882 = vpop.f32.mrf.mxu0
  %883 = vmatprep.mubr.bf16.mxu0 0
  %884 = vmatmul.mubr.bf16.gmra.mxu0 %v723
  %v885 = vpop.f32.mrf.mxu0
  %v886 = vadd.f32 %v770, %v885
  %v887 = vpop.f32.mrf.mxu0
  %v888 = vpop.f32.mrf.mxu0
  %v889 = vadd.f32 %v770, %v888
  %v890 = vpop.f32.mrf.mxu0
  %891 = vmatprep.mubr.bf16.mxu0 0
  %892 = vmatmul.mubr.bf16.gmra.mxu0 %v724
  %v893 = vpop.f32.mrf.mxu0
  %v894 = vadd.f32 %v770, %v893
  %v895 = vpop.f32.mrf.mxu0
  %v896 = vpop.f32.mrf.mxu0
  %v897 = vadd.f32 %v770, %v896
  %v898 = vpop.f32.mrf.mxu0
  %899 = vmatprep.mubr.bf16.mxu0 0
  %900 = vmatmul.mubr.bf16.gmra.mxu0 %v725
  %v901 = vpop.f32.mrf.mxu0
  %v902 = vadd.f32 %v770, %v901
  %v903 = vpop.f32.mrf.mxu0
  %v904 = vpop.f32.mrf.mxu0
  %v905 = vadd.f32 %v770, %v904
  %v906 = vpop.f32.mrf.mxu0
  %907 = vmatprep.mubr.bf16.mxu0 0
  %908 = vmatmul.mubr.bf16.gmra.mxu0 %v726
  %v909 = vpop.f32.mrf.mxu0
  %v910 = vadd.f32 %v770, %v909
  %v911 = vpop.f32.mrf.mxu0
  %v912 = vpop.f32.mrf.mxu0
  %v913 = vadd.f32 %v770, %v912
  %v914 = vpop.f32.mrf.mxu0
  %915 = vmatprep.mubr.bf16.mxu0 0
  %916 = vmatmul.mubr.bf16.gmra.mxu0 %v727
  %v917 = vpop.f32.mrf.mxu0
  %v918 = vadd.f32 %v770, %v917
  %v919 = vpop.f32.mrf.mxu0
  %v920 = vpop.f32.mrf.mxu0
  %v921 = vadd.f32 %v770, %v920
  %v922 = vpop.f32.mrf.mxu0
  %923 = vmatprep.mubr.bf16.mxu0 0
  %924 = vmatmul.mubr.bf16.gmra.mxu0 %v728
  %v925 = vpop.f32.mrf.mxu0
  %v926 = vadd.f32 %v770, %v925
  %v927 = vpop.f32.mrf.mxu0
  %v928 = vpop.f32.mrf.mxu0
  %v929 = vadd.f32 %v770, %v928
  %v930 = vpop.f32.mrf.mxu0
  %931 = vmatprep.mubr.bf16.mxu0 0
  %932 = vmatmul.mubr.bf16.gmra.mxu0 %v729
  %v933 = vpop.f32.mrf.mxu0
  %v934 = vadd.f32 %v770, %v933
  %v935 = vpop.f32.mrf.mxu0
  %v936 = vpop.f32.mrf.mxu0
  %v937 = vadd.f32 %v770, %v936
  %v938 = vpop.f32.mrf.mxu0
  %939 = vmatprep.mubr.bf16.mxu0 0
  %940 = vmatmul.mubr.bf16.gmra.mxu0 %v730
  %v941 = vpop.f32.mrf.mxu0
  %v942 = vadd.f32 %v770, %v941
  %v943 = vpop.f32.mrf.mxu0
  %v944 = vpop.f32.mrf.mxu0
  %v945 = vadd.f32 %v770, %v944
  %v946 = vpop.f32.mrf.mxu0
  %947 = vmatprep.mubr.bf16.mxu0 0
  %948 = vmatmul.mubr.bf16.gmra.mxu0 %v731
  %v949 = vpop.f32.mrf.mxu0
  %v950 = vadd.f32 %v770, %v949
  %v951 = vpop.f32.mrf.mxu0
  %v952 = vpop.f32.mrf.mxu0
  %v953 = vadd.f32 %v770, %v952
  %v954 = vpop.f32.mrf.mxu0
  %955 = vmatprep.mubr.bf16.mxu0 0
  %956 = vmatmul.mubr.bf16.gmra.mxu0 %v732
  %v957 = vpop.f32.mrf.mxu0
  %v958 = vadd.f32 %v770, %v957
  %v959 = vpop.f32.mrf.mxu0
  %v960 = vpop.f32.mrf.mxu0
  %v961 = vadd.f32 %v770, %v960
  %v962 = vpop.f32.mrf.mxu0
  %963 = vmatprep.mubr.bf16.mxu0 0
  %964 = vmatmul.mubr.bf16.gmra.mxu0 %v733
  %v965 = vpop.f32.mrf.mxu0
  %v966 = vadd.f32 %v770, %v965
  %v967 = vpop.f32.mrf.mxu0
  %v968 = vpop.f32.mrf.mxu0
  %v969 = vadd.f32 %v770, %v968
  %v970 = vpop.f32.mrf.mxu0
  %971 = vmatprep.mubr.bf16.mxu0 0
  %972 = vmatmul.mubr.bf16.gmra.mxu0 %v734
  %v973 = vpop.f32.mrf.mxu0
  %v974 = vadd.f32 %v770, %v973
  %v975 = vpop.f32.mrf.mxu0
  %v976 = vpop.f32.mrf.mxu0
  %v977 = vadd.f32 %v770, %v976
  %v978 = vpop.f32.mrf.mxu0
  %979 = vmatprep.mubr.bf16.mxu0 0
  %980 = vmatmul.mubr.bf16.gmra.mxu0 %v735
  %v981 = vpop.f32.mrf.mxu0
  %v982 = vadd.f32 %v770, %v981
  %v983 = vpop.f32.mrf.mxu0
  %v984 = vpop.f32.mrf.mxu0
  %v985 = vadd.f32 %v770, %v984
  %v986 = vpop.f32.mrf.mxu0
  %987 = vmatprep.mubr.bf16.mxu0 0
  %988 = vmatmul.mubr.bf16.gmra.mxu0 %v736
  %v989 = vpop.f32.mrf.mxu0
  %v990 = vadd.f32 %v770, %v989
  %v991 = vpop.f32.mrf.mxu0
  %v992 = vpop.f32.mrf.mxu0
  %v993 = vadd.f32 %v770, %v992
  %v994 = vpop.f32.mrf.mxu0
  %995 = vmatprep.mubr.bf16.mxu0 0
  %996 = vmatmul.mubr.bf16.gmra.mxu0 %v737
  %v997 = vpop.f32.mrf.mxu0
  %v998 = vadd.f32 %v770, %v997
  %v999 = vpop.f32.mrf.mxu0
  %v1000 = vpop.f32.mrf.mxu0
  %v1001 = vadd.f32 %v770, %v1000
  %v1002 = vpop.f32.mrf.mxu0
  %1003 = vmatprep.mubr.bf16.mxu0 0
  %1004 = vmatmul.mubr.bf16.gmra.mxu0 %v738
  %v1005 = vpop.f32.mrf.mxu0
  %v1006 = vadd.f32 %v770, %v1005
  %v1007 = vpop.f32.mrf.mxu0
  %v1008 = vpop.f32.mrf.mxu0
  %v1009 = vadd.f32 %v770, %v1008
  %v1010 = vpop.f32.mrf.mxu0
  %1011 = vmatprep.mubr.bf16.mxu0 0
  %1012 = vmatmul.mubr.bf16.gmra.mxu0 %v739
  %v1013 = vpop.f32.mrf.mxu0
  %v1014 = vadd.f32 %v770, %v1013
  %v1015 = vpop.f32.mrf.mxu0
  %v1016 = vpop.f32.mrf.mxu0
  %v1017 = vadd.f32 %v770, %v1016
  %v1018 = vpop.f32.mrf.mxu0
  %1019 = vmatprep.mubr.bf16.mxu0 0
  %1020 = vmatmul.mubr.bf16.gmra.mxu0 %v740
  %v1021 = vpop.f32.mrf.mxu0
  %v1022 = vadd.f32 %v770, %v1021
  %v1023 = vpop.f32.mrf.mxu0
  %v1024 = vpop.f32.mrf.mxu0
  %v1025 = vadd.f32 %v770, %v1024
  %v1026 = vpop.f32.mrf.mxu0
  %1027 = vmatprep.mubr.bf16.mxu0 0
  %1028 = vmatmul.mubr.bf16.gmra.mxu0 %v741
  %v1029 = vpop.f32.mrf.mxu0
  %v1030 = vadd.f32 %v770, %v1029
  %v1031 = vpop.f32.mrf.mxu0
  %v1032 = vpop.f32.mrf.mxu0
  %v1033 = vadd.f32 %v770, %v1032
  %v1034 = vpop.f32.mrf.mxu0
  %1035 = vmatprep.mubr.bf16.mxu0 0
  %1036 = vmatmul.mubr.bf16.gmra.mxu0 %v742
  %v1037 = vpop.f32.mrf.mxu0
  %v1038 = vadd.f32 %v770, %v1037
  %v1039 = vpop.f32.mrf.mxu0
  %v1040 = vpop.f32.mrf.mxu0
  %v1041 = vadd.f32 %v770, %v1040
  %v1042 = vpop.f32.mrf.mxu0
  %1043 = vmatprep.mubr.bf16.mxu0 0
  %1044 = vmatmul.mubr.bf16.gmra.mxu0 %v743
  %v1045 = vpop.f32.mrf.mxu0
  %v1046 = vadd.f32 %v770, %v1045
  %v1047 = vpop.f32.mrf.mxu0
  %v1048 = vpop.f32.mrf.mxu0
  %v1049 = vadd.f32 %v770, %v1048
  %v1050 = vpop.f32.mrf.mxu0
  %1051 = vmatprep.mubr.bf16.mxu0 0
  %1052 = vmatmul.mubr.bf16.gmra.mxu0 %v744
  %v1053 = vpop.f32.mrf.mxu0
  %v1054 = vadd.f32 %v770, %v1053
  %v1055 = vpop.f32.mrf.mxu0
  %v1056 = vpop.f32.mrf.mxu0
  %v1057 = vadd.f32 %v770, %v1056
  %v1058 = vpop.f32.mrf.mxu0
  %1059 = vmatprep.mubr.bf16.mxu0 0
  %1060 = vmatmul.mubr.bf16.gmra.mxu0 %v745
  %v1061 = vpop.f32.mrf.mxu0
  %v1062 = vadd.f32 %v770, %v1061
  %v1063 = vpop.f32.mrf.mxu0
  %v1064 = vpop.f32.mrf.mxu0
  %v1065 = vadd.f32 %v770, %v1064
  %v1066 = vpop.f32.mrf.mxu0
  %1067 = vmatprep.mubr.bf16.mxu0 0
  %1068 = vmatmul.mubr.bf16.gmra.mxu0 %v746
  %v1069 = vpop.f32.mrf.mxu0
  %v1070 = vadd.f32 %v770, %v1069
  %v1071 = vpop.f32.mrf.mxu0
  %v1072 = vpop.f32.mrf.mxu0
  %v1073 = vadd.f32 %v770, %v1072
  %v1074 = vpop.f32.mrf.mxu0
  %1075 = vmatprep.mubr.bf16.mxu0 0
  %1076 = vmatmul.mubr.bf16.gmra.mxu0 %v747
  %v1077 = vpop.f32.mrf.mxu0
  %v1078 = vadd.f32 %v770, %v1077
  %v1079 = vpop.f32.mrf.mxu0
  %v1080 = vpop.f32.mrf.mxu0
  %v1081 = vadd.f32 %v770, %v1080
  %v1082 = vpop.f32.mrf.mxu0
  %1083 = vmatprep.mubr.bf16.mxu0 0
  %1084 = vmatmul.mubr.bf16.gmra.mxu0 %v748
  %v1085 = vpop.f32.mrf.mxu0
  %v1086 = vadd.f32 %v770, %v1085
  %v1087 = vpop.f32.mrf.mxu0
  %v1088 = vpop.f32.mrf.mxu0
  %v1089 = vadd.f32 %v770, %v1088
  %v1090 = vpop.f32.mrf.mxu0
  %1091 = vmatprep.mubr.bf16.mxu0 0
  %1092 = vmatmul.mubr.bf16.gmra.mxu0 %v749
  %v1093 = vpop.f32.mrf.mxu0
  %v1094 = vadd.f32 %v770, %v1093
  %v1095 = vpop.f32.mrf.mxu0
  %v1096 = vpop.f32.mrf.mxu0
  %v1097 = vadd.f32 %v770, %v1096
  %v1098 = vpop.f32.mrf.mxu0
  %1099 = vmatprep.mubr.bf16.mxu0 0
  %1100 = vmatmul.mubr.bf16.gmra.mxu0 %v750
  %v1101 = vpop.f32.mrf.mxu0
  %v1102 = vadd.f32 %v770, %v1101
  %v1103 = vpop.f32.mrf.mxu0
  %v1104 = vpop.f32.mrf.mxu0
  %v1105 = vadd.f32 %v770, %v1104
  %v1106 = vpop.f32.mrf.mxu0
  %1107 = vdwg.mxu0
  %v1108 = vmax.f32 %v854, 0.0
  %v1109 = vmax.f32 %v857, 0.0
  %v1110 = vmax.f32 %v862, 0.0
  %v1111 = vmax.f32 %v865, 0.0
  %v1112 = vmax.f32 %v870, 0.0
  %v1113 = vmax.f32 %v873, 0.0
  %v1114 = vmax.f32 %v878, 0.0
  %v1115 = vmax.f32 %v881, 0.0
  %v1116 = vmax.f32 %v886, 0.0
  %v1117 = vmax.f32 %v889, 0.0
  %v1118 = vmax.f32 %v894, 0.0
  %v1119 = vmax.f32 %v897, 0.0
  %v1120 = vmax.f32 %v902, 0.0
  %v1121 = vmax.f32 %v905, 0.0
  %v1122 = vmax.f32 %v910, 0.0
  %v1123 = vmax.f32 %v913, 0.0
  %v1124 = vmax.f32 %v918, 0.0
  %v1125 = vmax.f32 %v921, 0.0
  %v1126 = vmax.f32 %v926, 0.0
  %v1127 = vmax.f32 %v929, 0.0
  %v1128 = vmax.f32 %v934, 0.0
  %v1129 = vmax.f32 %v937, 0.0
  %v1130 = vmax.f32 %v942, 0.0
  %v1131 = vmax.f32 %v945, 0.0
  %v1132 = vmax.f32 %v950, 0.0
  %v1133 = vmax.f32 %v953, 0.0
  %v1134 = vmax.f32 %v958, 0.0
  %v1135 = vmax.f32 %v961, 0.0
  %v1136 = vmax.f32 %v966, 0.0
  %v1137 = vmax.f32 %v969, 0.0
  %v1138 = vmax.f32 %v974, 0.0
  %v1139 = vmax.f32 %v977, 0.0
  %v1140 = vmax.f32 %v982, 0.0
  %v1141 = vmax.f32 %v985, 0.0
  %v1142 = vmax.f32 %v990, 0.0
  %v1143 = vmax.f32 %v993, 0.0
  %v1144 = vmax.f32 %v998, 0.0
  %v1145 = vmax.f32 %v1001, 0.0
  %v1146 = vmax.f32 %v1006, 0.0
  %v1147 = vmax.f32 %v1009, 0.0
  %v1148 = vmax.f32 %v1014, 0.0
  %v1149 = vmax.f32 %v1017, 0.0
  %v1150 = vmax.f32 %v1022, 0.0
  %v1151 = vmax.f32 %v1025, 0.0
  %v1152 = vmax.f32 %v1030, 0.0
  %v1153 = vmax.f32 %v1033, 0.0
  %v1154 = vmax.f32 %v1038, 0.0
  %v1155 = vmax.f32 %v1041, 0.0
  %v1156 = vmax.f32 %v1046, 0.0
  %v1157 = vmax.f32 %v1049, 0.0
  %v1158 = vmax.f32 %v1054, 0.0
  %v1159 = vmax.f32 %v1057, 0.0
  %v1160 = vmax.f32 %v1062, 0.0
  %v1161 = vmax.f32 %v1065, 0.0
  %v1162 = vmax.f32 %v1070, 0.0
  %v1163 = vmax.f32 %v1073, 0.0
  %v1164 = vmax.f32 %v1078, 0.0
  %v1165 = vmax.f32 %v1081, 0.0
  %v1166 = vmax.f32 %v1086, 0.0
  %v1167 = vmax.f32 %v1089, 0.0
  %v1168 = vmax.f32 %v1094, 0.0
  %v1169 = vmax.f32 %v1097, 0.0
  %v1170 = vmax.f32 %v1102, 0.0
  %v1171 = vmax.f32 %v1105, 0.0
  %v1172 = vpack.c.bf16 %v1109, %v1108
  %v1173 = vpack.c.bf16 %v1111, %v1110
  %v1174 = vpack.c.bf16 %v1113, %v1112
  %v1175 = vpack.c.bf16 %v1115, %v1114
  %v1176 = vpack.c.bf16 %v1117, %v1116
  %v1177 = vpack.c.bf16 %v1119, %v1118
  %v1178 = vpack.c.bf16 %v1121, %v1120
  %v1179 = vpack.c.bf16 %v1123, %v1122
  %v1180 = vpack.c.bf16 %v1125, %v1124
  %v1181 = vpack.c.bf16 %v1127, %v1126
  %v1182 = vpack.c.bf16 %v1129, %v1128
  %v1183 = vpack.c.bf16 %v1131, %v1130
  %v1184 = vpack.c.bf16 %v1133, %v1132
  %v1185 = vpack.c.bf16 %v1135, %v1134
  %v1186 = vpack.c.bf16 %v1137, %v1136
  %v1187 = vpack.c.bf16 %v1139, %v1138
  %v1188 = vpack.c.bf16 %v1141, %v1140
  %v1189 = vpack.c.bf16 %v1143, %v1142
  %v1190 = vpack.c.bf16 %v1145, %v1144
  %v1191 = vpack.c.bf16 %v1147, %v1146
  %v1192 = vpack.c.bf16 %v1149, %v1148
  %v1193 = vpack.c.bf16 %v1151, %v1150
  %v1194 = vpack.c.bf16 %v1153, %v1152
  %v1195 = vpack.c.bf16 %v1155, %v1154
  %v1196 = vpack.c.bf16 %v1157, %v1156
  %v1197 = vpack.c.bf16 %v1159, %v1158
  %v1198 = vpack.c.bf16 %v1161, %v1160
  %v1199 = vpack.c.bf16 %v1163, %v1162
  %v1200 = vpack.c.bf16 %v1165, %v1164
  %v1201 = vpack.c.bf16 %v1167, %v1166
  %v1202 = vpack.c.bf16 %v1169, %v1168
  %v1203 = vpack.c.bf16 %v1171, %v1170
  %s1204 = scalar_lea.vmem %s2, 64
  %v1205 = vld [vmem:[%s1204] sm:$0xf]
  %v1206 = vld [vmem:[%s1204 + $0x4] sm:$0xf]
  %v1207 = vld [vmem:[%s1204 + $0x8] sm:$0xf]
  %v1208 = vld [vmem:[%s1204 + $0xc] sm:$0xf]
  %v1209 = vld [vmem:[%s1204 + $0x10] sm:$0xf]
  %v1210 = vld [vmem:[%s1204 + $0x14] sm:$0xf]
  %v1211 = vld [vmem:[%s1204 + $0x18] sm:$0xf]
  %v1212 = vld [vmem:[%s1204 + $0x1c] sm:$0xf]
  %v1213 = vld [vmem:[%s1204 + $0x20] sm:$0xf]
  %v1214 = vld [vmem:[%s1204 + $0x24] sm:$0xf]
  %v1215 = vld [vmem:[%s1204 + $0x28] sm:$0xf]
  %v1216 = vld [vmem:[%s1204 + $0x2c] sm:$0xf]
  %v1217 = vld [vmem:[%s1204 + $0x30] sm:$0xf]
  %v1218 = vld [vmem:[%s1204 + $0x34] sm:$0xf]
  %v1219 = vld [vmem:[%s1204 + $0x38] sm:$0xf]
  %v1220 = vld [vmem:[%s1204 + $0x3c] sm:$0xf]
  %v1221 = vlaneseq
  %v1222 = vshrl.u32 %v1221, 7
  %v1223 = vsub.s32 2, %v1222
  %v1224 = vrot.slane %v88, %v1223
  %v1241 = vunpack.c.l.b16 %v1205
  %v1242 = vunpack.c.l.b16 %v1206
  %v1243 = vunpack.c.l.b16 %v1207
  %v1244 = vunpack.c.l.b16 %v1208
  %v1245 = vunpack.c.l.b16 %v1209
  %v1246 = vunpack.c.l.b16 %v1210
  %v1247 = vunpack.c.l.b16 %v1211
  %v1248 = vunpack.c.l.b16 %v1212
  %v1249 = vunpack.c.l.b16 %v1213
  %v1250 = vunpack.c.l.b16 %v1214
  %v1251 = vunpack.c.l.b16 %v1215
  %v1252 = vunpack.c.l.b16 %v1216
  %v1253 = vunpack.c.l.b16 %v1217
  %v1254 = vunpack.c.l.b16 %v1218
  %v1255 = vunpack.c.l.b16 %v1219
  %v1256 = vunpack.c.l.b16 %v1220
  %v1257 = vpack.c.b16 %v1242, %v1241
  %v1258 = vpack.c.b16 %v1244, %v1243
  %v1259 = vpack.c.b16 %v1246, %v1245
  %v1260 = vpack.c.b16 %v1248, %v1247
  %v1261 = vpack.c.b16 %v1250, %v1249
  %v1262 = vpack.c.b16 %v1252, %v1251
  %v1263 = vpack.c.b16 %v1254, %v1253
  %v1264 = vpack.c.b16 %v1256, %v1255
  %1273 = vmatprep.subr.bf16.mxu0 0
  %1274 = vmatpush1.bf16.msra.mxu0 %v1264
  %1275 = vmatprep.subr.bf16.mxu0 0
  %1276 = vmatpush1.bf16.msra.mxu0 %v1263
  %1277 = vmatprep.subr.bf16.mxu0 0
  %1278 = vmatpush1.bf16.msra.mxu0 %v1262
  %1279 = vmatprep.subr.bf16.mxu0 0
  %1280 = vmatpush1.bf16.msra.mxu0 %v1261
  %1281 = vmatprep.subr.bf16.mxu0 0
  %1282 = vmatpush1.bf16.msra.mxu0 %v1260
  %1283 = vmatprep.subr.bf16.mxu0 0
  %1284 = vmatpush1.bf16.msra.mxu0 %v1259
  %1285 = vmatprep.subr.bf16.mxu0 0
  %1286 = vmatpush1.bf16.msra.mxu0 %v1258
  %1287 = vmatprep.subr.bf16.mxu0 0
  %1288 = vmatpush1.bf16.msra.mxu0 %v1257
  %1289 = vmatprep.subr.bf16.mxu0 0
  %1290 = vmatpush2.bf16.msra.mxu0 0
  %1291 = vmatprep.subr.bf16.mxu0 0
  %1292 = vmatpush2.bf16.msra.mxu0 0
  %1293 = vmatprep.subr.bf16.mxu0 0
  %1294 = vmatpush2.bf16.msra.mxu0 0
  %1295 = vmatprep.subr.bf16.mxu0 0
  %1296 = vmatpush2.bf16.msra.mxu0 0
  %1297 = vmatprep.subr.bf16.mxu0 0
  %1298 = vmatpush2.bf16.msra.mxu0 0
  %1299 = vmatprep.subr.bf16.mxu0 0
  %1300 = vmatpush2.bf16.msra.mxu0 0
  %1301 = vmatprep.subr.bf16.mxu0 0
  %1302 = vmatpush2.bf16.msra.mxu0 0
  %1303 = vmatprep.subr.bf16.mxu0 0
  %1304 = vmatpush2.bf16.msra.mxu0 0
  %1305 = vmatprep.mubr.bf16.mxu0 0
  %1306 = vmatmul.mubr.bf16.gmra.mxu0 %v1172
  %v1307 = vpop.f32.mrf.mxu0
  %v1308 = vadd.f32 %v1224, %v1307
  %v1309 = vpop.f32.mrf.mxu0
  %v1310 = vpop.f32.mrf.mxu0
  %v1311 = vadd.f32 %v1224, %v1310
  %v1312 = vpop.f32.mrf.mxu0
  %1313 = vmatprep.mubr.bf16.mxu0 0
  %1314 = vmatmul.mubr.bf16.gmra.mxu0 %v1173
  %v1315 = vpop.f32.mrf.mxu0
  %v1316 = vadd.f32 %v1224, %v1315
  %v1317 = vpop.f32.mrf.mxu0
  %v1318 = vpop.f32.mrf.mxu0
  %v1319 = vadd.f32 %v1224, %v1318
  %v1320 = vpop.f32.mrf.mxu0
  %1321 = vmatprep.mubr.bf16.mxu0 0
  %1322 = vmatmul.mubr.bf16.gmra.mxu0 %v1174
  %v1323 = vpop.f32.mrf.mxu0
  %v1324 = vadd.f32 %v1224, %v1323
  %v1325 = vpop.f32.mrf.mxu0
  %v1326 = vpop.f32.mrf.mxu0
  %v1327 = vadd.f32 %v1224, %v1326
  %v1328 = vpop.f32.mrf.mxu0
  %1329 = vmatprep.mubr.bf16.mxu0 0
  %1330 = vmatmul.mubr.bf16.gmra.mxu0 %v1175
  %v1331 = vpop.f32.mrf.mxu0
  %v1332 = vadd.f32 %v1224, %v1331
  %v1333 = vpop.f32.mrf.mxu0
  %v1334 = vpop.f32.mrf.mxu0
  %v1335 = vadd.f32 %v1224, %v1334
  %v1336 = vpop.f32.mrf.mxu0
  %1337 = vmatprep.mubr.bf16.mxu0 0
  %1338 = vmatmul.mubr.bf16.gmra.mxu0 %v1176
  %v1339 = vpop.f32.mrf.mxu0
  %v1340 = vadd.f32 %v1224, %v1339
  %v1341 = vpop.f32.mrf.mxu0
  %v1342 = vpop.f32.mrf.mxu0
  %v1343 = vadd.f32 %v1224, %v1342
  %v1344 = vpop.f32.mrf.mxu0
  %1345 = vmatprep.mubr.bf16.mxu0 0
  %1346 = vmatmul.mubr.bf16.gmra.mxu0 %v1177
  %v1347 = vpop.f32.mrf.mxu0
  %v1348 = vadd.f32 %v1224, %v1347
  %v1349 = vpop.f32.mrf.mxu0
  %v1350 = vpop.f32.mrf.mxu0
  %v1351 = vadd.f32 %v1224, %v1350
  %v1352 = vpop.f32.mrf.mxu0
  %1353 = vmatprep.mubr.bf16.mxu0 0
  %1354 = vmatmul.mubr.bf16.gmra.mxu0 %v1178
  %v1355 = vpop.f32.mrf.mxu0
  %v1356 = vadd.f32 %v1224, %v1355
  %v1357 = vpop.f32.mrf.mxu0
  %v1358 = vpop.f32.mrf.mxu0
  %v1359 = vadd.f32 %v1224, %v1358
  %v1360 = vpop.f32.mrf.mxu0
  %1361 = vmatprep.mubr.bf16.mxu0 0
  %1362 = vmatmul.mubr.bf16.gmra.mxu0 %v1179
  %v1363 = vpop.f32.mrf.mxu0
  %v1364 = vadd.f32 %v1224, %v1363
  %v1365 = vpop.f32.mrf.mxu0
  %v1366 = vpop.f32.mrf.mxu0
  %v1367 = vadd.f32 %v1224, %v1366
  %v1368 = vpop.f32.mrf.mxu0
  %1369 = vmatprep.mubr.bf16.mxu0 0
  %1370 = vmatmul.mubr.bf16.gmra.mxu0 %v1180
  %v1371 = vpop.f32.mrf.mxu0
  %v1372 = vadd.f32 %v1224, %v1371
  %v1373 = vpop.f32.mrf.mxu0
  %v1374 = vpop.f32.mrf.mxu0
  %v1375 = vadd.f32 %v1224, %v1374
  %v1376 = vpop.f32.mrf.mxu0
  %1377 = vmatprep.mubr.bf16.mxu0 0
  %1378 = vmatmul.mubr.bf16.gmra.mxu0 %v1181
  %v1379 = vpop.f32.mrf.mxu0
  %v1380 = vadd.f32 %v1224, %v1379
  %v1381 = vpop.f32.mrf.mxu0
  %v1382 = vpop.f32.mrf.mxu0
  %v1383 = vadd.f32 %v1224, %v1382
  %v1384 = vpop.f32.mrf.mxu0
  %1385 = vmatprep.mubr.bf16.mxu0 0
  %1386 = vmatmul.mubr.bf16.gmra.mxu0 %v1182
  %v1387 = vpop.f32.mrf.mxu0
  %v1388 = vadd.f32 %v1224, %v1387
  %v1389 = vpop.f32.mrf.mxu0
  %v1390 = vpop.f32.mrf.mxu0
  %v1391 = vadd.f32 %v1224, %v1390
  %v1392 = vpop.f32.mrf.mxu0
  %1393 = vmatprep.mubr.bf16.mxu0 0
  %1394 = vmatmul.mubr.bf16.gmra.mxu0 %v1183
  %v1395 = vpop.f32.mrf.mxu0
  %v1396 = vadd.f32 %v1224, %v1395
  %v1397 = vpop.f32.mrf.mxu0
  %v1398 = vpop.f32.mrf.mxu0
  %v1399 = vadd.f32 %v1224, %v1398
  %v1400 = vpop.f32.mrf.mxu0
  %1401 = vmatprep.mubr.bf16.mxu0 0
  %1402 = vmatmul.mubr.bf16.gmra.mxu0 %v1184
  %v1403 = vpop.f32.mrf.mxu0
  %v1404 = vadd.f32 %v1224, %v1403
  %v1405 = vpop.f32.mrf.mxu0
  %v1406 = vpop.f32.mrf.mxu0
  %v1407 = vadd.f32 %v1224, %v1406
  %v1408 = vpop.f32.mrf.mxu0
  %1409 = vmatprep.mubr.bf16.mxu0 0
  %1410 = vmatmul.mubr.bf16.gmra.mxu0 %v1185
  %v1411 = vpop.f32.mrf.mxu0
  %v1412 = vadd.f32 %v1224, %v1411
  %v1413 = vpop.f32.mrf.mxu0
  %v1414 = vpop.f32.mrf.mxu0
  %v1415 = vadd.f32 %v1224, %v1414
  %v1416 = vpop.f32.mrf.mxu0
  %1417 = vmatprep.mubr.bf16.mxu0 0
  %1418 = vmatmul.mubr.bf16.gmra.mxu0 %v1186
  %v1419 = vpop.f32.mrf.mxu0
  %v1420 = vadd.f32 %v1224, %v1419
  %v1421 = vpop.f32.mrf.mxu0
  %v1422 = vpop.f32.mrf.mxu0
  %v1423 = vadd.f32 %v1224, %v1422
  %v1424 = vpop.f32.mrf.mxu0
  %1425 = vmatprep.mubr.bf16.mxu0 0
  %1426 = vmatmul.mubr.bf16.gmra.mxu0 %v1187
  %v1427 = vpop.f32.mrf.mxu0
  %v1428 = vadd.f32 %v1224, %v1427
  %v1429 = vpop.f32.mrf.mxu0
  %v1430 = vpop.f32.mrf.mxu0
  %v1431 = vadd.f32 %v1224, %v1430
  %v1432 = vpop.f32.mrf.mxu0
  %1433 = vmatprep.mubr.bf16.mxu0 0
  %1434 = vmatmul.mubr.bf16.gmra.mxu0 %v1188
  %v1435 = vpop.f32.mrf.mxu0
  %v1436 = vadd.f32 %v1224, %v1435
  %v1437 = vpop.f32.mrf.mxu0
  %v1438 = vpop.f32.mrf.mxu0
  %v1439 = vadd.f32 %v1224, %v1438
  %v1440 = vpop.f32.mrf.mxu0
  %1441 = vmatprep.mubr.bf16.mxu0 0
  %1442 = vmatmul.mubr.bf16.gmra.mxu0 %v1189
  %v1443 = vpop.f32.mrf.mxu0
  %v1444 = vadd.f32 %v1224, %v1443
  %v1445 = vpop.f32.mrf.mxu0
  %v1446 = vpop.f32.mrf.mxu0
  %v1447 = vadd.f32 %v1224, %v1446
  %v1448 = vpop.f32.mrf.mxu0
  %1449 = vmatprep.mubr.bf16.mxu0 0
  %1450 = vmatmul.mubr.bf16.gmra.mxu0 %v1190
  %v1451 = vpop.f32.mrf.mxu0
  %v1452 = vadd.f32 %v1224, %v1451
  %v1453 = vpop.f32.mrf.mxu0
  %v1454 = vpop.f32.mrf.mxu0
  %v1455 = vadd.f32 %v1224, %v1454
  %v1456 = vpop.f32.mrf.mxu0
  %1457 = vmatprep.mubr.bf16.mxu0 0
  %1458 = vmatmul.mubr.bf16.gmra.mxu0 %v1191
  %v1459 = vpop.f32.mrf.mxu0
  %v1460 = vadd.f32 %v1224, %v1459
  %v1461 = vpop.f32.mrf.mxu0
  %v1462 = vpop.f32.mrf.mxu0
  %v1463 = vadd.f32 %v1224, %v1462
  %v1464 = vpop.f32.mrf.mxu0
  %1465 = vmatprep.mubr.bf16.mxu0 0
  %1466 = vmatmul.mubr.bf16.gmra.mxu0 %v1192
  %v1467 = vpop.f32.mrf.mxu0
  %v1468 = vadd.f32 %v1224, %v1467
  %v1469 = vpop.f32.mrf.mxu0
  %v1470 = vpop.f32.mrf.mxu0
  %v1471 = vadd.f32 %v1224, %v1470
  %v1472 = vpop.f32.mrf.mxu0
  %1473 = vmatprep.mubr.bf16.mxu0 0
  %1474 = vmatmul.mubr.bf16.gmra.mxu0 %v1193
  %v1475 = vpop.f32.mrf.mxu0
  %v1476 = vadd.f32 %v1224, %v1475
  %v1477 = vpop.f32.mrf.mxu0
  %v1478 = vpop.f32.mrf.mxu0
  %v1479 = vadd.f32 %v1224, %v1478
  %v1480 = vpop.f32.mrf.mxu0
  %1481 = vmatprep.mubr.bf16.mxu0 0
  %1482 = vmatmul.mubr.bf16.gmra.mxu0 %v1194
  %v1483 = vpop.f32.mrf.mxu0
  %v1484 = vadd.f32 %v1224, %v1483
  %v1485 = vpop.f32.mrf.mxu0
  %v1486 = vpop.f32.mrf.mxu0
  %v1487 = vadd.f32 %v1224, %v1486
  %v1488 = vpop.f32.mrf.mxu0
  %1489 = vmatprep.mubr.bf16.mxu0 0
  %1490 = vmatmul.mubr.bf16.gmra.mxu0 %v1195
  %v1491 = vpop.f32.mrf.mxu0
  %v1492 = vadd.f32 %v1224, %v1491
  %v1493 = vpop.f32.mrf.mxu0
  %v1494 = vpop.f32.mrf.mxu0
  %v1495 = vadd.f32 %v1224, %v1494
  %v1496 = vpop.f32.mrf.mxu0
  %1497 = vmatprep.mubr.bf16.mxu0 0
  %1498 = vmatmul.mubr.bf16.gmra.mxu0 %v1196
  %v1499 = vpop.f32.mrf.mxu0
  %v1500 = vadd.f32 %v1224, %v1499
  %v1501 = vpop.f32.mrf.mxu0
  %v1502 = vpop.f32.mrf.mxu0
  %v1503 = vadd.f32 %v1224, %v1502
  %v1504 = vpop.f32.mrf.mxu0
  %1505 = vmatprep.mubr.bf16.mxu0 0
  %1506 = vmatmul.mubr.bf16.gmra.mxu0 %v1197
  %v1507 = vpop.f32.mrf.mxu0
  %v1508 = vadd.f32 %v1224, %v1507
  %v1509 = vpop.f32.mrf.mxu0
  %v1510 = vpop.f32.mrf.mxu0
  %v1511 = vadd.f32 %v1224, %v1510
  %v1512 = vpop.f32.mrf.mxu0
  %1513 = vmatprep.mubr.bf16.mxu0 0
  %1514 = vmatmul.mubr.bf16.gmra.mxu0 %v1198
  %v1515 = vpop.f32.mrf.mxu0
  %v1516 = vadd.f32 %v1224, %v1515
  %v1517 = vpop.f32.mrf.mxu0
  %v1518 = vpop.f32.mrf.mxu0
  %v1519 = vadd.f32 %v1224, %v1518
  %v1520 = vpop.f32.mrf.mxu0
  %1521 = vmatprep.mubr.bf16.mxu0 0
  %1522 = vmatmul.mubr.bf16.gmra.mxu0 %v1199
  %v1523 = vpop.f32.mrf.mxu0
  %v1524 = vadd.f32 %v1224, %v1523
  %v1525 = vpop.f32.mrf.mxu0
  %v1526 = vpop.f32.mrf.mxu0
  %v1527 = vadd.f32 %v1224, %v1526
  %v1528 = vpop.f32.mrf.mxu0
  %1529 = vmatprep.mubr.bf16.mxu0 0
  %1530 = vmatmul.mubr.bf16.gmra.mxu0 %v1200
  %v1531 = vpop.f32.mrf.mxu0
  %v1532 = vadd.f32 %v1224, %v1531
  %v1533 = vpop.f32.mrf.mxu0
  %v1534 = vpop.f32.mrf.mxu0
  %v1535 = vadd.f32 %v1224, %v1534
  %v1536 = vpop.f32.mrf.mxu0
  %1537 = vmatprep.mubr.bf16.mxu0 0
  %1538 = vmatmul.mubr.bf16.gmra.mxu0 %v1201
  %v1539 = vpop.f32.mrf.mxu0
  %v1540 = vadd.f32 %v1224, %v1539
  %v1541 = vpop.f32.mrf.mxu0
  %v1542 = vpop.f32.mrf.mxu0
  %v1543 = vadd.f32 %v1224, %v1542
  %v1544 = vpop.f32.mrf.mxu0
  %1545 = vmatprep.mubr.bf16.mxu0 0
  %1546 = vmatmul.mubr.bf16.gmra.mxu0 %v1202
  %v1547 = vpop.f32.mrf.mxu0
  %v1548 = vadd.f32 %v1224, %v1547
  %v1549 = vpop.f32.mrf.mxu0
  %v1550 = vpop.f32.mrf.mxu0
  %v1551 = vadd.f32 %v1224, %v1550
  %v1552 = vpop.f32.mrf.mxu0
  %1553 = vmatprep.mubr.bf16.mxu0 0
  %1554 = vmatmul.mubr.bf16.gmra.mxu0 %v1203
  %v1555 = vpop.f32.mrf.mxu0
  %v1556 = vadd.f32 %v1224, %v1555
  %v1557 = vpop.f32.mrf.mxu0
  %v1558 = vpop.f32.mrf.mxu0
  %v1559 = vadd.f32 %v1224, %v1558
  %v1560 = vpop.f32.mrf.mxu0
  %1561 = vdwg.mxu0
  %v1562 = vadd.f32 %v1308, %v655
  %v1563 = vadd.f32 %v1311, %v656
  %v1564 = vadd.f32 %v1316, %v657
  %v1565 = vadd.f32 %v1319, %v658
  %v1566 = vadd.f32 %v1324, %v659
  %v1567 = vadd.f32 %v1327, %v660
  %v1568 = vadd.f32 %v1332, %v661
  %v1569 = vadd.f32 %v1335, %v662
  %v1570 = vadd.f32 %v1340, %v663
  %v1571 = vadd.f32 %v1343, %v664
  %v1572 = vadd.f32 %v1348, %v665
  %v1573 = vadd.f32 %v1351, %v666
  %v1574 = vadd.f32 %v1356, %v667
  %v1575 = vadd.f32 %v1359, %v668
  %v1576 = vadd.f32 %v1364, %v669
  %v1577 = vadd.f32 %v1367, %v670
  %v1578 = vadd.f32 %v1372, %v671
  %v1579 = vadd.f32 %v1375, %v672
  %v1580 = vadd.f32 %v1380, %v673
  %v1581 = vadd.f32 %v1383, %v674
  %v1582 = vadd.f32 %v1388, %v675
  %v1583 = vadd.f32 %v1391, %v676
  %v1584 = vadd.f32 %v1396, %v677
  %v1585 = vadd.f32 %v1399, %v678
  %v1586 = vadd.f32 %v1404, %v679
  %v1587 = vadd.f32 %v1407, %v680
  %v1588 = vadd.f32 %v1412, %v681
  %v1589 = vadd.f32 %v1415, %v682
  %v1590 = vadd.f32 %v1420, %v683
  %v1591 = vadd.f32 %v1423, %v684
  %v1592 = vadd.f32 %v1428, %v685
  %v1593 = vadd.f32 %v1431, %v686
  %v1594 = vadd.f32 %v1436, %v687
  %v1595 = vadd.f32 %v1439, %v688
  %v1596 = vadd.f32 %v1444, %v689
  %v1597 = vadd.f32 %v1447, %v690
  %v1598 = vadd.f32 %v1452, %v691
  %v1599 = vadd.f32 %v1455, %v692
  %v1600 = vadd.f32 %v1460, %v693
  %v1601 = vadd.f32 %v1463, %v694
  %v1602 = vadd.f32 %v1468, %v695
  %v1603 = vadd.f32 %v1471, %v696
  %v1604 = vadd.f32 %v1476, %v697
  %v1605 = vadd.f32 %v1479, %v698
  %v1606 = vadd.f32 %v1484, %v699
  %v1607 = vadd.f32 %v1487, %v700
  %v1608 = vadd.f32 %v1492, %v701
  %v1609 = vadd.f32 %v1495, %v702
  %v1610 = vadd.f32 %v1500, %v703
  %v1611 = vadd.f32 %v1503, %v704
  %v1612 = vadd.f32 %v1508, %v705
  %v1613 = vadd.f32 %v1511, %v706
  %v1614 = vadd.f32 %v1516, %v707
  %v1615 = vadd.f32 %v1519, %v708
  %v1616 = vadd.f32 %v1524, %v709
  %v1617 = vadd.f32 %v1527, %v710
  %v1618 = vadd.f32 %v1532, %v711
  %v1619 = vadd.f32 %v1535, %v712
  %v1620 = vadd.f32 %v1540, %v713
  %v1621 = vadd.f32 %v1543, %v714
  %v1622 = vadd.f32 %v1548, %v715
  %v1623 = vadd.f32 %v1551, %v716
  %v1624 = vadd.f32 %v1556, %v717
  %v1625 = vadd.f32 %v1559, %v718
  %v1626 = vmax.f32 %v1562, 0.0
  %v1627 = vmax.f32 %v1563, 0.0
  %v1628 = vmax.f32 %v1564, 0.0
  %v1629 = vmax.f32 %v1565, 0.0
  %v1630 = vmax.f32 %v1566, 0.0
  %v1631 = vmax.f32 %v1567, 0.0
  %v1632 = vmax.f32 %v1568, 0.0
  %v1633 = vmax.f32 %v1569, 0.0
  %v1634 = vmax.f32 %v1570, 0.0
  %v1635 = vmax.f32 %v1571, 0.0
  %v1636 = vmax.f32 %v1572, 0.0
  %v1637 = vmax.f32 %v1573, 0.0
  %v1638 = vmax.f32 %v1574, 0.0
  %v1639 = vmax.f32 %v1575, 0.0
  %v1640 = vmax.f32 %v1576, 0.0
  %v1641 = vmax.f32 %v1577, 0.0
  %v1642 = vmax.f32 %v1578, 0.0
  %v1643 = vmax.f32 %v1579, 0.0
  %v1644 = vmax.f32 %v1580, 0.0
  %v1645 = vmax.f32 %v1581, 0.0
  %v1646 = vmax.f32 %v1582, 0.0
  %v1647 = vmax.f32 %v1583, 0.0
  %v1648 = vmax.f32 %v1584, 0.0
  %v1649 = vmax.f32 %v1585, 0.0
  %v1650 = vmax.f32 %v1586, 0.0
  %v1651 = vmax.f32 %v1587, 0.0
  %v1652 = vmax.f32 %v1588, 0.0
  %v1653 = vmax.f32 %v1589, 0.0
  %v1654 = vmax.f32 %v1590, 0.0
  %v1655 = vmax.f32 %v1591, 0.0
  %v1656 = vmax.f32 %v1592, 0.0
  %v1657 = vmax.f32 %v1593, 0.0
  %v1658 = vmax.f32 %v1594, 0.0
  %v1659 = vmax.f32 %v1595, 0.0
  %v1660 = vmax.f32 %v1596, 0.0
  %v1661 = vmax.f32 %v1597, 0.0
  %v1662 = vmax.f32 %v1598, 0.0
  %v1663 = vmax.f32 %v1599, 0.0
  %v1664 = vmax.f32 %v1600, 0.0
  %v1665 = vmax.f32 %v1601, 0.0
  %v1666 = vmax.f32 %v1602, 0.0
  %v1667 = vmax.f32 %v1603, 0.0
  %v1668 = vmax.f32 %v1604, 0.0
  %v1669 = vmax.f32 %v1605, 0.0
  %v1670 = vmax.f32 %v1606, 0.0
  %v1671 = vmax.f32 %v1607, 0.0
  %v1672 = vmax.f32 %v1608, 0.0
  %v1673 = vmax.f32 %v1609, 0.0
  %v1674 = vmax.f32 %v1610, 0.0
  %v1675 = vmax.f32 %v1611, 0.0
  %v1676 = vmax.f32 %v1612, 0.0
  %v1677 = vmax.f32 %v1613, 0.0
  %v1678 = vmax.f32 %v1614, 0.0
  %v1679 = vmax.f32 %v1615, 0.0
  %v1680 = vmax.f32 %v1616, 0.0
  %v1681 = vmax.f32 %v1617, 0.0
  %v1682 = vmax.f32 %v1618, 0.0
  %v1683 = vmax.f32 %v1619, 0.0
  %v1684 = vmax.f32 %v1620, 0.0
  %v1685 = vmax.f32 %v1621, 0.0
  %v1686 = vmax.f32 %v1622, 0.0
  %v1687 = vmax.f32 %v1623, 0.0
  %v1688 = vmax.f32 %v1624, 0.0
  %v1689 = vmax.f32 %v1625, 0.0
  %v1690 = vpack.c.bf16 %v1627, %v1626
  %v1691 = vpack.c.bf16 %v1629, %v1628
  %v1692 = vpack.c.bf16 %v1631, %v1630
  %v1693 = vpack.c.bf16 %v1633, %v1632
  %v1694 = vpack.c.bf16 %v1635, %v1634
  %v1695 = vpack.c.bf16 %v1637, %v1636
  %v1696 = vpack.c.bf16 %v1639, %v1638
  %v1697 = vpack.c.bf16 %v1641, %v1640
  %v1698 = vpack.c.bf16 %v1643, %v1642
  %v1699 = vpack.c.bf16 %v1645, %v1644
  %v1700 = vpack.c.bf16 %v1647, %v1646
  %v1701 = vpack.c.bf16 %v1649, %v1648
  %v1702 = vpack.c.bf16 %v1651, %v1650
  %v1703 = vpack.c.bf16 %v1653, %v1652
  %v1704 = vpack.c.bf16 %v1655, %v1654
  %v1705 = vpack.c.bf16 %v1657, %v1656
  %v1706 = vpack.c.bf16 %v1659, %v1658
  %v1707 = vpack.c.bf16 %v1661, %v1660
  %v1708 = vpack.c.bf16 %v1663, %v1662
  %v1709 = vpack.c.bf16 %v1665, %v1664
  %v1710 = vpack.c.bf16 %v1667, %v1666
  %v1711 = vpack.c.bf16 %v1669, %v1668
  %v1712 = vpack.c.bf16 %v1671, %v1670
  %v1713 = vpack.c.bf16 %v1673, %v1672
  %v1714 = vpack.c.bf16 %v1675, %v1674
  %v1715 = vpack.c.bf16 %v1677, %v1676
  %v1716 = vpack.c.bf16 %v1679, %v1678
  %v1717 = vpack.c.bf16 %v1681, %v1680
  %v1718 = vpack.c.bf16 %v1683, %v1682
  %v1719 = vpack.c.bf16 %v1685, %v1684
  %v1720 = vpack.c.bf16 %v1687, %v1686
  %v1721 = vpack.c.bf16 %v1689, %v1688
  %s1722 = scalar_lea.vmem %s2, 128
  %v1723 = vld [vmem:[%s1722] sm:$0xf]
  %v1724 = vld [vmem:[%s1722 + $0x4] sm:$0xf]
  %v1725 = vld [vmem:[%s1722 + $0x8] sm:$0xf]
  %v1726 = vld [vmem:[%s1722 + $0xc] sm:$0xf]
  %v1727 = vld [vmem:[%s1722 + $0x10] sm:$0xf]
  %v1728 = vld [vmem:[%s1722 + $0x14] sm:$0xf]
  %v1729 = vld [vmem:[%s1722 + $0x18] sm:$0xf]
  %v1730 = vld [vmem:[%s1722 + $0x1c] sm:$0xf]
  %v1731 = vld [vmem:[%s1722 + $0x20] sm:$0xf]
  %v1732 = vld [vmem:[%s1722 + $0x24] sm:$0xf]
  %v1733 = vld [vmem:[%s1722 + $0x28] sm:$0xf]
  %v1734 = vld [vmem:[%s1722 + $0x2c] sm:$0xf]
  %v1735 = vld [vmem:[%s1722 + $0x30] sm:$0xf]
  %v1736 = vld [vmem:[%s1722 + $0x34] sm:$0xf]
  %v1737 = vld [vmem:[%s1722 + $0x38] sm:$0xf]
  %v1738 = vld [vmem:[%s1722 + $0x3c] sm:$0xf]
  %v1739 = vlaneseq
  %v1740 = vshrl.u32 %v1739, 7
  %v1741 = vsub.s32 3, %v1740
  %v1742 = vrot.slane %v88, %v1741
  %v1759 = vunpack.c.l.b16 %v1723
  %v1760 = vunpack.c.l.b16 %v1724
  %v1761 = vunpack.c.l.b16 %v1725
  %v1762 = vunpack.c.l.b16 %v1726
  %v1763 = vunpack.c.l.b16 %v1727
  %v1764 = vunpack.c.l.b16 %v1728
  %v1765 = vunpack.c.l.b16 %v1729
  %v1766 = vunpack.c.l.b16 %v1730
  %v1767 = vunpack.c.l.b16 %v1731
  %v1768 = vunpack.c.l.b16 %v1732
  %v1769 = vunpack.c.l.b16 %v1733
  %v1770 = vunpack.c.l.b16 %v1734
  %v1771 = vunpack.c.l.b16 %v1735
  %v1772 = vunpack.c.l.b16 %v1736
  %v1773 = vunpack.c.l.b16 %v1737
  %v1774 = vunpack.c.l.b16 %v1738
  %v1775 = vpack.c.b16 %v1760, %v1759
  %v1776 = vpack.c.b16 %v1762, %v1761
  %v1777 = vpack.c.b16 %v1764, %v1763
  %v1778 = vpack.c.b16 %v1766, %v1765
  %v1779 = vpack.c.b16 %v1768, %v1767
  %v1780 = vpack.c.b16 %v1770, %v1769
  %v1781 = vpack.c.b16 %v1772, %v1771
  %v1782 = vpack.c.b16 %v1774, %v1773
  %1791 = vmatprep.subr.bf16.mxu0 0
  %1792 = vmatpush1.bf16.msra.mxu0 %v1782
  %1793 = vmatprep.subr.bf16.mxu0 0
  %1794 = vmatpush1.bf16.msra.mxu0 %v1781
  %1795 = vmatprep.subr.bf16.mxu0 0
  %1796 = vmatpush1.bf16.msra.mxu0 %v1780
  %1797 = vmatprep.subr.bf16.mxu0 0
  %1798 = vmatpush1.bf16.msra.mxu0 %v1779
  %1799 = vmatprep.subr.bf16.mxu0 0
  %1800 = vmatpush1.bf16.msra.mxu0 %v1778
  %1801 = vmatprep.subr.bf16.mxu0 0
  %1802 = vmatpush1.bf16.msra.mxu0 %v1777
  %1803 = vmatprep.subr.bf16.mxu0 0
  %1804 = vmatpush1.bf16.msra.mxu0 %v1776
  %1805 = vmatprep.subr.bf16.mxu0 0
  %1806 = vmatpush1.bf16.msra.mxu0 %v1775
  %1807 = vmatprep.subr.bf16.mxu0 0
  %1808 = vmatpush2.bf16.msra.mxu0 0
  %1809 = vmatprep.subr.bf16.mxu0 0
  %1810 = vmatpush2.bf16.msra.mxu0 0
  %1811 = vmatprep.subr.bf16.mxu0 0
  %1812 = vmatpush2.bf16.msra.mxu0 0
  %1813 = vmatprep.subr.bf16.mxu0 0
  %1814 = vmatpush2.bf16.msra.mxu0 0
  %1815 = vmatprep.subr.bf16.mxu0 0
  %1816 = vmatpush2.bf16.msra.mxu0 0
  %1817 = vmatprep.subr.bf16.mxu0 0
  %1818 = vmatpush2.bf16.msra.mxu0 0
  %1819 = vmatprep.subr.bf16.mxu0 0
  %1820 = vmatpush2.bf16.msra.mxu0 0
  %1821 = vmatprep.subr.bf16.mxu0 0
  %1822 = vmatpush2.bf16.msra.mxu0 0
  %1823 = vmatprep.mubr.bf16.mxu0 0
  %1824 = vmatmul.mubr.bf16.gmra.mxu0 %v1690
  %v1825 = vpop.f32.mrf.mxu0
  %v1826 = vadd.f32 %v1742, %v1825
  %v1827 = vpop.f32.mrf.mxu0
  %v1828 = vpop.f32.mrf.mxu0
  %v1829 = vadd.f32 %v1742, %v1828
  %v1830 = vpop.f32.mrf.mxu0
  %1831 = vmatprep.mubr.bf16.mxu0 0
  %1832 = vmatmul.mubr.bf16.gmra.mxu0 %v1691
  %v1833 = vpop.f32.mrf.mxu0
  %v1834 = vadd.f32 %v1742, %v1833
  %v1835 = vpop.f32.mrf.mxu0
  %v1836 = vpop.f32.mrf.mxu0
  %v1837 = vadd.f32 %v1742, %v1836
  %v1838 = vpop.f32.mrf.mxu0
  %1839 = vmatprep.mubr.bf16.mxu0 0
  %1840 = vmatmul.mubr.bf16.gmra.mxu0 %v1692
  %v1841 = vpop.f32.mrf.mxu0
  %v1842 = vadd.f32 %v1742, %v1841
  %v1843 = vpop.f32.mrf.mxu0
  %v1844 = vpop.f32.mrf.mxu0
  %v1845 = vadd.f32 %v1742, %v1844
  %v1846 = vpop.f32.mrf.mxu0
  %1847 = vmatprep.mubr.bf16.mxu0 0
  %1848 = vmatmul.mubr.bf16.gmra.mxu0 %v1693
  %v1849 = vpop.f32.mrf.mxu0
  %v1850 = vadd.f32 %v1742, %v1849
  %v1851 = vpop.f32.mrf.mxu0
  %v1852 = vpop.f32.mrf.mxu0
  %v1853 = vadd.f32 %v1742, %v1852
  %v1854 = vpop.f32.mrf.mxu0
  %1855 = vmatprep.mubr.bf16.mxu0 0
  %1856 = vmatmul.mubr.bf16.gmra.mxu0 %v1694
  %v1857 = vpop.f32.mrf.mxu0
  %v1858 = vadd.f32 %v1742, %v1857
  %v1859 = vpop.f32.mrf.mxu0
  %v1860 = vpop.f32.mrf.mxu0
  %v1861 = vadd.f32 %v1742, %v1860
  %v1862 = vpop.f32.mrf.mxu0
  %1863 = vmatprep.mubr.bf16.mxu0 0
  %1864 = vmatmul.mubr.bf16.gmra.mxu0 %v1695
  %v1865 = vpop.f32.mrf.mxu0
  %v1866 = vadd.f32 %v1742, %v1865
  %v1867 = vpop.f32.mrf.mxu0
  %v1868 = vpop.f32.mrf.mxu0
  %v1869 = vadd.f32 %v1742, %v1868
  %v1870 = vpop.f32.mrf.mxu0
  %1871 = vmatprep.mubr.bf16.mxu0 0
  %1872 = vmatmul.mubr.bf16.gmra.mxu0 %v1696
  %v1873 = vpop.f32.mrf.mxu0
  %v1874 = vadd.f32 %v1742, %v1873
  %v1875 = vpop.f32.mrf.mxu0
  %v1876 = vpop.f32.mrf.mxu0
  %v1877 = vadd.f32 %v1742, %v1876
  %v1878 = vpop.f32.mrf.mxu0
  %1879 = vmatprep.mubr.bf16.mxu0 0
  %1880 = vmatmul.mubr.bf16.gmra.mxu0 %v1697
  %v1881 = vpop.f32.mrf.mxu0
  %v1882 = vadd.f32 %v1742, %v1881
  %v1883 = vpop.f32.mrf.mxu0
  %v1884 = vpop.f32.mrf.mxu0
  %v1885 = vadd.f32 %v1742, %v1884
  %v1886 = vpop.f32.mrf.mxu0
  %1887 = vmatprep.mubr.bf16.mxu0 0
  %1888 = vmatmul.mubr.bf16.gmra.mxu0 %v1698
  %v1889 = vpop.f32.mrf.mxu0
  %v1890 = vadd.f32 %v1742, %v1889
  %v1891 = vpop.f32.mrf.mxu0
  %v1892 = vpop.f32.mrf.mxu0
  %v1893 = vadd.f32 %v1742, %v1892
  %v1894 = vpop.f32.mrf.mxu0
  %1895 = vmatprep.mubr.bf16.mxu0 0
  %1896 = vmatmul.mubr.bf16.gmra.mxu0 %v1699
  %v1897 = vpop.f32.mrf.mxu0
  %v1898 = vadd.f32 %v1742, %v1897
  %v1899 = vpop.f32.mrf.mxu0
  %v1900 = vpop.f32.mrf.mxu0
  %v1901 = vadd.f32 %v1742, %v1900
  %v1902 = vpop.f32.mrf.mxu0
  %1903 = vmatprep.mubr.bf16.mxu0 0
  %1904 = vmatmul.mubr.bf16.gmra.mxu0 %v1700
  %v1905 = vpop.f32.mrf.mxu0
  %v1906 = vadd.f32 %v1742, %v1905
  %v1907 = vpop.f32.mrf.mxu0
  %v1908 = vpop.f32.mrf.mxu0
  %v1909 = vadd.f32 %v1742, %v1908
  %v1910 = vpop.f32.mrf.mxu0
  %1911 = vmatprep.mubr.bf16.mxu0 0
  %1912 = vmatmul.mubr.bf16.gmra.mxu0 %v1701
  %v1913 = vpop.f32.mrf.mxu0
  %v1914 = vadd.f32 %v1742, %v1913
  %v1915 = vpop.f32.mrf.mxu0
  %v1916 = vpop.f32.mrf.mxu0
  %v1917 = vadd.f32 %v1742, %v1916
  %v1918 = vpop.f32.mrf.mxu0
  %1919 = vmatprep.mubr.bf16.mxu0 0
  %1920 = vmatmul.mubr.bf16.gmra.mxu0 %v1702
  %v1921 = vpop.f32.mrf.mxu0
  %v1922 = vadd.f32 %v1742, %v1921
  %v1923 = vpop.f32.mrf.mxu0
  %v1924 = vpop.f32.mrf.mxu0
  %v1925 = vadd.f32 %v1742, %v1924
  %v1926 = vpop.f32.mrf.mxu0
  %1927 = vmatprep.mubr.bf16.mxu0 0
  %1928 = vmatmul.mubr.bf16.gmra.mxu0 %v1703
  %v1929 = vpop.f32.mrf.mxu0
  %v1930 = vadd.f32 %v1742, %v1929
  %v1931 = vpop.f32.mrf.mxu0
  %v1932 = vpop.f32.mrf.mxu0
  %v1933 = vadd.f32 %v1742, %v1932
  %v1934 = vpop.f32.mrf.mxu0
  %1935 = vmatprep.mubr.bf16.mxu0 0
  %1936 = vmatmul.mubr.bf16.gmra.mxu0 %v1704
  %v1937 = vpop.f32.mrf.mxu0
  %v1938 = vadd.f32 %v1742, %v1937
  %v1939 = vpop.f32.mrf.mxu0
  %v1940 = vpop.f32.mrf.mxu0
  %v1941 = vadd.f32 %v1742, %v1940
  %v1942 = vpop.f32.mrf.mxu0
  %1943 = vmatprep.mubr.bf16.mxu0 0
  %1944 = vmatmul.mubr.bf16.gmra.mxu0 %v1705
  %v1945 = vpop.f32.mrf.mxu0
  %v1946 = vadd.f32 %v1742, %v1945
  %v1947 = vpop.f32.mrf.mxu0
  %v1948 = vpop.f32.mrf.mxu0
  %v1949 = vadd.f32 %v1742, %v1948
  %v1950 = vpop.f32.mrf.mxu0
  %1951 = vmatprep.mubr.bf16.mxu0 0
  %1952 = vmatmul.mubr.bf16.gmra.mxu0 %v1706
  %v1953 = vpop.f32.mrf.mxu0
  %v1954 = vadd.f32 %v1742, %v1953
  %v1955 = vpop.f32.mrf.mxu0
  %v1956 = vpop.f32.mrf.mxu0
  %v1957 = vadd.f32 %v1742, %v1956
  %v1958 = vpop.f32.mrf.mxu0
  %1959 = vmatprep.mubr.bf16.mxu0 0
  %1960 = vmatmul.mubr.bf16.gmra.mxu0 %v1707
  %v1961 = vpop.f32.mrf.mxu0
  %v1962 = vadd.f32 %v1742, %v1961
  %v1963 = vpop.f32.mrf.mxu0
  %v1964 = vpop.f32.mrf.mxu0
  %v1965 = vadd.f32 %v1742, %v1964
  %v1966 = vpop.f32.mrf.mxu0
  %1967 = vmatprep.mubr.bf16.mxu0 0
  %1968 = vmatmul.mubr.bf16.gmra.mxu0 %v1708
  %v1969 = vpop.f32.mrf.mxu0
  %v1970 = vadd.f32 %v1742, %v1969
  %v1971 = vpop.f32.mrf.mxu0
  %v1972 = vpop.f32.mrf.mxu0
  %v1973 = vadd.f32 %v1742, %v1972
  %v1974 = vpop.f32.mrf.mxu0
  %1975 = vmatprep.mubr.bf16.mxu0 0
  %1976 = vmatmul.mubr.bf16.gmra.mxu0 %v1709
  %v1977 = vpop.f32.mrf.mxu0
  %v1978 = vadd.f32 %v1742, %v1977
  %v1979 = vpop.f32.mrf.mxu0
  %v1980 = vpop.f32.mrf.mxu0
  %v1981 = vadd.f32 %v1742, %v1980
  %v1982 = vpop.f32.mrf.mxu0
  %1983 = vmatprep.mubr.bf16.mxu0 0
  %1984 = vmatmul.mubr.bf16.gmra.mxu0 %v1710
  %v1985 = vpop.f32.mrf.mxu0
  %v1986 = vadd.f32 %v1742, %v1985
  %v1987 = vpop.f32.mrf.mxu0
  %v1988 = vpop.f32.mrf.mxu0
  %v1989 = vadd.f32 %v1742, %v1988
  %v1990 = vpop.f32.mrf.mxu0
  %1991 = vmatprep.mubr.bf16.mxu0 0
  %1992 = vmatmul.mubr.bf16.gmra.mxu0 %v1711
  %v1993 = vpop.f32.mrf.mxu0
  %v1994 = vadd.f32 %v1742, %v1993
  %v1995 = vpop.f32.mrf.mxu0
  %v1996 = vpop.f32.mrf.mxu0
  %v1997 = vadd.f32 %v1742, %v1996
  %v1998 = vpop.f32.mrf.mxu0
  %1999 = vmatprep.mubr.bf16.mxu0 0
  %2000 = vmatmul.mubr.bf16.gmra.mxu0 %v1712
  %v2001 = vpop.f32.mrf.mxu0
  %v2002 = vadd.f32 %v1742, %v2001
  %v2003 = vpop.f32.mrf.mxu0
  %v2004 = vpop.f32.mrf.mxu0
  %v2005 = vadd.f32 %v1742, %v2004
  %v2006 = vpop.f32.mrf.mxu0
  %2007 = vmatprep.mubr.bf16.mxu0 0
  %2008 = vmatmul.mubr.bf16.gmra.mxu0 %v1713
  %v2009 = vpop.f32.mrf.mxu0
  %v2010 = vadd.f32 %v1742, %v2009
  %v2011 = vpop.f32.mrf.mxu0
  %v2012 = vpop.f32.mrf.mxu0
  %v2013 = vadd.f32 %v1742, %v2012
  %v2014 = vpop.f32.mrf.mxu0
  %2015 = vmatprep.mubr.bf16.mxu0 0
  %2016 = vmatmul.mubr.bf16.gmra.mxu0 %v1714
  %v2017 = vpop.f32.mrf.mxu0
  %v2018 = vadd.f32 %v1742, %v2017
  %v2019 = vpop.f32.mrf.mxu0
  %v2020 = vpop.f32.mrf.mxu0
  %v2021 = vadd.f32 %v1742, %v2020
  %v2022 = vpop.f32.mrf.mxu0
  %2023 = vmatprep.mubr.bf16.mxu0 0
  %2024 = vmatmul.mubr.bf16.gmra.mxu0 %v1715
  %v2025 = vpop.f32.mrf.mxu0
  %v2026 = vadd.f32 %v1742, %v2025
  %v2027 = vpop.f32.mrf.mxu0
  %v2028 = vpop.f32.mrf.mxu0
  %v2029 = vadd.f32 %v1742, %v2028
  %v2030 = vpop.f32.mrf.mxu0
  %2031 = vmatprep.mubr.bf16.mxu0 0
  %2032 = vmatmul.mubr.bf16.gmra.mxu0 %v1716
  %v2033 = vpop.f32.mrf.mxu0
  %v2034 = vadd.f32 %v1742, %v2033
  %v2035 = vpop.f32.mrf.mxu0
  %v2036 = vpop.f32.mrf.mxu0
  %v2037 = vadd.f32 %v1742, %v2036
  %v2038 = vpop.f32.mrf.mxu0
  %2039 = vmatprep.mubr.bf16.mxu0 0
  %2040 = vmatmul.mubr.bf16.gmra.mxu0 %v1717
  %v2041 = vpop.f32.mrf.mxu0
  %v2042 = vadd.f32 %v1742, %v2041
  %v2043 = vpop.f32.mrf.mxu0
  %v2044 = vpop.f32.mrf.mxu0
  %v2045 = vadd.f32 %v1742, %v2044
  %v2046 = vpop.f32.mrf.mxu0
  %2047 = vmatprep.mubr.bf16.mxu0 0
  %2048 = vmatmul.mubr.bf16.gmra.mxu0 %v1718
  %v2049 = vpop.f32.mrf.mxu0
  %v2050 = vadd.f32 %v1742, %v2049
  %v2051 = vpop.f32.mrf.mxu0
  %v2052 = vpop.f32.mrf.mxu0
  %v2053 = vadd.f32 %v1742, %v2052
  %v2054 = vpop.f32.mrf.mxu0
  %2055 = vmatprep.mubr.bf16.mxu0 0
  %2056 = vmatmul.mubr.bf16.gmra.mxu0 %v1719
  %v2057 = vpop.f32.mrf.mxu0
  %v2058 = vadd.f32 %v1742, %v2057
  %v2059 = vpop.f32.mrf.mxu0
  %v2060 = vpop.f32.mrf.mxu0
  %v2061 = vadd.f32 %v1742, %v2060
  %v2062 = vpop.f32.mrf.mxu0
  %2063 = vmatprep.mubr.bf16.mxu0 0
  %2064 = vmatmul.mubr.bf16.gmra.mxu0 %v1720
  %v2065 = vpop.f32.mrf.mxu0
  %v2066 = vadd.f32 %v1742, %v2065
  %v2067 = vpop.f32.mrf.mxu0
  %v2068 = vpop.f32.mrf.mxu0
  %v2069 = vadd.f32 %v1742, %v2068
  %v2070 = vpop.f32.mrf.mxu0
  %2071 = vmatprep.mubr.bf16.mxu0 0
  %2072 = vmatmul.mubr.bf16.gmra.mxu0 %v1721
  %v2073 = vpop.f32.mrf.mxu0
  %v2074 = vadd.f32 %v1742, %v2073
  %v2075 = vpop.f32.mrf.mxu0
  %v2076 = vpop.f32.mrf.mxu0
  %v2077 = vadd.f32 %v1742, %v2076
  %v2078 = vpop.f32.mrf.mxu0
  %2079 = vdwg.mxu0
  %v2080 = vmax.f32 %v1826, 0.0
  %v2081 = vmax.f32 %v1829, 0.0
  %v2082 = vmax.f32 %v1834, 0.0
  %v2083 = vmax.f32 %v1837, 0.0
  %v2084 = vmax.f32 %v1842, 0.0
  %v2085 = vmax.f32 %v1845, 0.0
  %v2086 = vmax.f32 %v1850, 0.0
  %v2087 = vmax.f32 %v1853, 0.0
  %v2088 = vmax.f32 %v1858, 0.0
  %v2089 = vmax.f32 %v1861, 0.0
  %v2090 = vmax.f32 %v1866, 0.0
  %v2091 = vmax.f32 %v1869, 0.0
  %v2092 = vmax.f32 %v1874, 0.0
  %v2093 = vmax.f32 %v1877, 0.0
  %v2094 = vmax.f32 %v1882, 0.0
  %v2095 = vmax.f32 %v1885, 0.0
  %v2096 = vmax.f32 %v1890, 0.0
  %v2097 = vmax.f32 %v1893, 0.0
  %v2098 = vmax.f32 %v1898, 0.0
  %v2099 = vmax.f32 %v1901, 0.0
  %v2100 = vmax.f32 %v1906, 0.0
  %v2101 = vmax.f32 %v1909, 0.0
  %v2102 = vmax.f32 %v1914, 0.0
  %v2103 = vmax.f32 %v1917, 0.0
  %v2104 = vmax.f32 %v1922, 0.0
  %v2105 = vmax.f32 %v1925, 0.0
  %v2106 = vmax.f32 %v1930, 0.0
  %v2107 = vmax.f32 %v1933, 0.0
  %v2108 = vmax.f32 %v1938, 0.0
  %v2109 = vmax.f32 %v1941, 0.0
  %v2110 = vmax.f32 %v1946, 0.0
  %v2111 = vmax.f32 %v1949, 0.0
  %v2112 = vmax.f32 %v1954, 0.0
  %v2113 = vmax.f32 %v1957, 0.0
  %v2114 = vmax.f32 %v1962, 0.0
  %v2115 = vmax.f32 %v1965, 0.0
  %v2116 = vmax.f32 %v1970, 0.0
  %v2117 = vmax.f32 %v1973, 0.0
  %v2118 = vmax.f32 %v1978, 0.0
  %v2119 = vmax.f32 %v1981, 0.0
  %v2120 = vmax.f32 %v1986, 0.0
  %v2121 = vmax.f32 %v1989, 0.0
  %v2122 = vmax.f32 %v1994, 0.0
  %v2123 = vmax.f32 %v1997, 0.0
  %v2124 = vmax.f32 %v2002, 0.0
  %v2125 = vmax.f32 %v2005, 0.0
  %v2126 = vmax.f32 %v2010, 0.0
  %v2127 = vmax.f32 %v2013, 0.0
  %v2128 = vmax.f32 %v2018, 0.0
  %v2129 = vmax.f32 %v2021, 0.0
  %v2130 = vmax.f32 %v2026, 0.0
  %v2131 = vmax.f32 %v2029, 0.0
  %v2132 = vmax.f32 %v2034, 0.0
  %v2133 = vmax.f32 %v2037, 0.0
  %v2134 = vmax.f32 %v2042, 0.0
  %v2135 = vmax.f32 %v2045, 0.0
  %v2136 = vmax.f32 %v2050, 0.0
  %v2137 = vmax.f32 %v2053, 0.0
  %v2138 = vmax.f32 %v2058, 0.0
  %v2139 = vmax.f32 %v2061, 0.0
  %v2140 = vmax.f32 %v2066, 0.0
  %v2141 = vmax.f32 %v2069, 0.0
  %v2142 = vmax.f32 %v2074, 0.0
  %v2143 = vmax.f32 %v2077, 0.0
  %v2144 = vpack.c.bf16 %v2081, %v2080
  %v2145 = vpack.c.bf16 %v2083, %v2082
  %v2146 = vpack.c.bf16 %v2085, %v2084
  %v2147 = vpack.c.bf16 %v2087, %v2086
  %v2148 = vpack.c.bf16 %v2089, %v2088
  %v2149 = vpack.c.bf16 %v2091, %v2090
  %v2150 = vpack.c.bf16 %v2093, %v2092
  %v2151 = vpack.c.bf16 %v2095, %v2094
  %v2152 = vpack.c.bf16 %v2097, %v2096
  %v2153 = vpack.c.bf16 %v2099, %v2098
  %v2154 = vpack.c.bf16 %v2101, %v2100
  %v2155 = vpack.c.bf16 %v2103, %v2102
  %v2156 = vpack.c.bf16 %v2105, %v2104
  %v2157 = vpack.c.bf16 %v2107, %v2106
  %v2158 = vpack.c.bf16 %v2109, %v2108
  %v2159 = vpack.c.bf16 %v2111, %v2110
  %v2160 = vpack.c.bf16 %v2113, %v2112
  %v2161 = vpack.c.bf16 %v2115, %v2114
  %v2162 = vpack.c.bf16 %v2117, %v2116
  %v2163 = vpack.c.bf16 %v2119, %v2118
  %v2164 = vpack.c.bf16 %v2121, %v2120
  %v2165 = vpack.c.bf16 %v2123, %v2122
  %v2166 = vpack.c.bf16 %v2125, %v2124
  %v2167 = vpack.c.bf16 %v2127, %v2126
  %v2168 = vpack.c.bf16 %v2129, %v2128
  %v2169 = vpack.c.bf16 %v2131, %v2130
  %v2170 = vpack.c.bf16 %v2133, %v2132
  %v2171 = vpack.c.bf16 %v2135, %v2134
  %v2172 = vpack.c.bf16 %v2137, %v2136
  %v2173 = vpack.c.bf16 %v2139, %v2138
  %v2174 = vpack.c.bf16 %v2141, %v2140
  %v2175 = vpack.c.bf16 %v2143, %v2142
  %s2176 = scalar_lea.vmem %s2, 192
  %v2177 = vld [vmem:[%s2176] sm:$0xf]
  %v2178 = vld [vmem:[%s2176 + $0x4] sm:$0xf]
  %v2179 = vld [vmem:[%s2176 + $0x8] sm:$0xf]
  %v2180 = vld [vmem:[%s2176 + $0xc] sm:$0xf]
  %v2181 = vld [vmem:[%s2176 + $0x10] sm:$0xf]
  %v2182 = vld [vmem:[%s2176 + $0x14] sm:$0xf]
  %v2183 = vld [vmem:[%s2176 + $0x18] sm:$0xf]
  %v2184 = vld [vmem:[%s2176 + $0x1c] sm:$0xf]
  %v2185 = vld [vmem:[%s2176 + $0x20] sm:$0xf]
  %v2186 = vld [vmem:[%s2176 + $0x24] sm:$0xf]
  %v2187 = vld [vmem:[%s2176 + $0x28] sm:$0xf]
  %v2188 = vld [vmem:[%s2176 + $0x2c] sm:$0xf]
  %v2189 = vld [vmem:[%s2176 + $0x30] sm:$0xf]
  %v2190 = vld [vmem:[%s2176 + $0x34] sm:$0xf]
  %v2191 = vld [vmem:[%s2176 + $0x38] sm:$0xf]
  %v2192 = vld [vmem:[%s2176 + $0x3c] sm:$0xf]
  %v2193 = vlaneseq
  %v2194 = vshrl.u32 %v2193, 7
  %v2195 = vsub.s32 4, %v2194
  %v2196 = vrot.slane %v88, %v2195
  %v2213 = vunpack.c.l.b16 %v2177
  %v2214 = vunpack.c.l.b16 %v2178
  %v2215 = vunpack.c.l.b16 %v2179
  %v2216 = vunpack.c.l.b16 %v2180
  %v2217 = vunpack.c.l.b16 %v2181
  %v2218 = vunpack.c.l.b16 %v2182
  %v2219 = vunpack.c.l.b16 %v2183
  %v2220 = vunpack.c.l.b16 %v2184
  %v2221 = vunpack.c.l.b16 %v2185
  %v2222 = vunpack.c.l.b16 %v2186
  %v2223 = vunpack.c.l.b16 %v2187
  %v2224 = vunpack.c.l.b16 %v2188
  %v2225 = vunpack.c.l.b16 %v2189
  %v2226 = vunpack.c.l.b16 %v2190
  %v2227 = vunpack.c.l.b16 %v2191
  %v2228 = vunpack.c.l.b16 %v2192
  %v2229 = vpack.c.b16 %v2214, %v2213
  %v2230 = vpack.c.b16 %v2216, %v2215
  %v2231 = vpack.c.b16 %v2218, %v2217
  %v2232 = vpack.c.b16 %v2220, %v2219
  %v2233 = vpack.c.b16 %v2222, %v2221
  %v2234 = vpack.c.b16 %v2224, %v2223
  %v2235 = vpack.c.b16 %v2226, %v2225
  %v2236 = vpack.c.b16 %v2228, %v2227
  %2245 = vmatprep.subr.bf16.mxu0 0
  %2246 = vmatpush1.bf16.msra.mxu0 %v2236
  %2247 = vmatprep.subr.bf16.mxu0 0
  %2248 = vmatpush1.bf16.msra.mxu0 %v2235
  %2249 = vmatprep.subr.bf16.mxu0 0
  %2250 = vmatpush1.bf16.msra.mxu0 %v2234
  %2251 = vmatprep.subr.bf16.mxu0 0
  %2252 = vmatpush1.bf16.msra.mxu0 %v2233
  %2253 = vmatprep.subr.bf16.mxu0 0
  %2254 = vmatpush1.bf16.msra.mxu0 %v2232
  %2255 = vmatprep.subr.bf16.mxu0 0
  %2256 = vmatpush1.bf16.msra.mxu0 %v2231
  %2257 = vmatprep.subr.bf16.mxu0 0
  %2258 = vmatpush1.bf16.msra.mxu0 %v2230
  %2259 = vmatprep.subr.bf16.mxu0 0
  %2260 = vmatpush1.bf16.msra.mxu0 %v2229
  %2261 = vmatprep.subr.bf16.mxu0 0
  %2262 = vmatpush2.bf16.msra.mxu0 0
  %2263 = vmatprep.subr.bf16.mxu0 0
  %2264 = vmatpush2.bf16.msra.mxu0 0
  %2265 = vmatprep.subr.bf16.mxu0 0
  %2266 = vmatpush2.bf16.msra.mxu0 0
  %2267 = vmatprep.subr.bf16.mxu0 0
  %2268 = vmatpush2.bf16.msra.mxu0 0
  %2269 = vmatprep.subr.bf16.mxu0 0
  %2270 = vmatpush2.bf16.msra.mxu0 0
  %2271 = vmatprep.subr.bf16.mxu0 0
  %2272 = vmatpush2.bf16.msra.mxu0 0
  %2273 = vmatprep.subr.bf16.mxu0 0
  %2274 = vmatpush2.bf16.msra.mxu0 0
  %2275 = vmatprep.subr.bf16.mxu0 0
  %2276 = vmatpush2.bf16.msra.mxu0 0
  %2277 = vmatprep.mubr.bf16.mxu0 0
  %2278 = vmatmul.mubr.bf16.gmra.mxu0 %v2144
  %v2279 = vpop.f32.mrf.mxu0
  %v2280 = vadd.f32 %v2196, %v2279
  %v2281 = vpop.f32.mrf.mxu0
  %v2282 = vpop.f32.mrf.mxu0
  %v2283 = vadd.f32 %v2196, %v2282
  %v2284 = vpop.f32.mrf.mxu0
  %2285 = vmatprep.mubr.bf16.mxu0 0
  %2286 = vmatmul.mubr.bf16.gmra.mxu0 %v2145
  %v2287 = vpop.f32.mrf.mxu0
  %v2288 = vadd.f32 %v2196, %v2287
  %v2289 = vpop.f32.mrf.mxu0
  %v2290 = vpop.f32.mrf.mxu0
  %v2291 = vadd.f32 %v2196, %v2290
  %v2292 = vpop.f32.mrf.mxu0
  %2293 = vmatprep.mubr.bf16.mxu0 0
  %2294 = vmatmul.mubr.bf16.gmra.mxu0 %v2146
  %v2295 = vpop.f32.mrf.mxu0
  %v2296 = vadd.f32 %v2196, %v2295
  %v2297 = vpop.f32.mrf.mxu0
  %v2298 = vpop.f32.mrf.mxu0
  %v2299 = vadd.f32 %v2196, %v2298
  %v2300 = vpop.f32.mrf.mxu0
  %2301 = vmatprep.mubr.bf16.mxu0 0
  %2302 = vmatmul.mubr.bf16.gmra.mxu0 %v2147
  %v2303 = vpop.f32.mrf.mxu0
  %v2304 = vadd.f32 %v2196, %v2303
  %v2305 = vpop.f32.mrf.mxu0
  %v2306 = vpop.f32.mrf.mxu0
  %v2307 = vadd.f32 %v2196, %v2306
  %v2308 = vpop.f32.mrf.mxu0
  %2309 = vmatprep.mubr.bf16.mxu0 0
  %2310 = vmatmul.mubr.bf16.gmra.mxu0 %v2148
  %v2311 = vpop.f32.mrf.mxu0
  %v2312 = vadd.f32 %v2196, %v2311
  %v2313 = vpop.f32.mrf.mxu0
  %v2314 = vpop.f32.mrf.mxu0
  %v2315 = vadd.f32 %v2196, %v2314
  %v2316 = vpop.f32.mrf.mxu0
  %2317 = vmatprep.mubr.bf16.mxu0 0
  %2318 = vmatmul.mubr.bf16.gmra.mxu0 %v2149
  %v2319 = vpop.f32.mrf.mxu0
  %v2320 = vadd.f32 %v2196, %v2319
  %v2321 = vpop.f32.mrf.mxu0
  %v2322 = vpop.f32.mrf.mxu0
  %v2323 = vadd.f32 %v2196, %v2322
  %v2324 = vpop.f32.mrf.mxu0
  %2325 = vmatprep.mubr.bf16.mxu0 0
  %2326 = vmatmul.mubr.bf16.gmra.mxu0 %v2150
  %v2327 = vpop.f32.mrf.mxu0
  %v2328 = vadd.f32 %v2196, %v2327
  %v2329 = vpop.f32.mrf.mxu0
  %v2330 = vpop.f32.mrf.mxu0
  %v2331 = vadd.f32 %v2196, %v2330
  %v2332 = vpop.f32.mrf.mxu0
  %2333 = vmatprep.mubr.bf16.mxu0 0
  %2334 = vmatmul.mubr.bf16.gmra.mxu0 %v2151
  %v2335 = vpop.f32.mrf.mxu0
  %v2336 = vadd.f32 %v2196, %v2335
  %v2337 = vpop.f32.mrf.mxu0
  %v2338 = vpop.f32.mrf.mxu0
  %v2339 = vadd.f32 %v2196, %v2338
  %v2340 = vpop.f32.mrf.mxu0
  %2341 = vmatprep.mubr.bf16.mxu0 0
  %2342 = vmatmul.mubr.bf16.gmra.mxu0 %v2152
  %v2343 = vpop.f32.mrf.mxu0
  %v2344 = vadd.f32 %v2196, %v2343
  %v2345 = vpop.f32.mrf.mxu0
  %v2346 = vpop.f32.mrf.mxu0
  %v2347 = vadd.f32 %v2196, %v2346
  %v2348 = vpop.f32.mrf.mxu0
  %2349 = vmatprep.mubr.bf16.mxu0 0
  %2350 = vmatmul.mubr.bf16.gmra.mxu0 %v2153
  %v2351 = vpop.f32.mrf.mxu0
  %v2352 = vadd.f32 %v2196, %v2351
  %v2353 = vpop.f32.mrf.mxu0
  %v2354 = vpop.f32.mrf.mxu0
  %v2355 = vadd.f32 %v2196, %v2354
  %v2356 = vpop.f32.mrf.mxu0
  %2357 = vmatprep.mubr.bf16.mxu0 0
  %2358 = vmatmul.mubr.bf16.gmra.mxu0 %v2154
  %v2359 = vpop.f32.mrf.mxu0
  %v2360 = vadd.f32 %v2196, %v2359
  %v2361 = vpop.f32.mrf.mxu0
  %v2362 = vpop.f32.mrf.mxu0
  %v2363 = vadd.f32 %v2196, %v2362
  %v2364 = vpop.f32.mrf.mxu0
  %2365 = vmatprep.mubr.bf16.mxu0 0
  %2366 = vmatmul.mubr.bf16.gmra.mxu0 %v2155
  %v2367 = vpop.f32.mrf.mxu0
  %v2368 = vadd.f32 %v2196, %v2367
  %v2369 = vpop.f32.mrf.mxu0
  %v2370 = vpop.f32.mrf.mxu0
  %v2371 = vadd.f32 %v2196, %v2370
  %v2372 = vpop.f32.mrf.mxu0
  %2373 = vmatprep.mubr.bf16.mxu0 0
  %2374 = vmatmul.mubr.bf16.gmra.mxu0 %v2156
  %v2375 = vpop.f32.mrf.mxu0
  %v2376 = vadd.f32 %v2196, %v2375
  %v2377 = vpop.f32.mrf.mxu0
  %v2378 = vpop.f32.mrf.mxu0
  %v2379 = vadd.f32 %v2196, %v2378
  %v2380 = vpop.f32.mrf.mxu0
  %2381 = vmatprep.mubr.bf16.mxu0 0
  %2382 = vmatmul.mubr.bf16.gmra.mxu0 %v2157
  %v2383 = vpop.f32.mrf.mxu0
  %v2384 = vadd.f32 %v2196, %v2383
  %v2385 = vpop.f32.mrf.mxu0
  %v2386 = vpop.f32.mrf.mxu0
  %v2387 = vadd.f32 %v2196, %v2386
  %v2388 = vpop.f32.mrf.mxu0
  %2389 = vmatprep.mubr.bf16.mxu0 0
  %2390 = vmatmul.mubr.bf16.gmra.mxu0 %v2158
  %v2391 = vpop.f32.mrf.mxu0
  %v2392 = vadd.f32 %v2196, %v2391
  %v2393 = vpop.f32.mrf.mxu0
  %v2394 = vpop.f32.mrf.mxu0
  %v2395 = vadd.f32 %v2196, %v2394
  %v2396 = vpop.f32.mrf.mxu0
  %2397 = vmatprep.mubr.bf16.mxu0 0
  %2398 = vmatmul.mubr.bf16.gmra.mxu0 %v2159
  %v2399 = vpop.f32.mrf.mxu0
  %v2400 = vadd.f32 %v2196, %v2399
  %v2401 = vpop.f32.mrf.mxu0
  %v2402 = vpop.f32.mrf.mxu0
  %v2403 = vadd.f32 %v2196, %v2402
  %v2404 = vpop.f32.mrf.mxu0
  %2405 = vmatprep.mubr.bf16.mxu0 0
  %2406 = vmatmul.mubr.bf16.gmra.mxu0 %v2160
  %v2407 = vpop.f32.mrf.mxu0
  %v2408 = vadd.f32 %v2196, %v2407
  %v2409 = vpop.f32.mrf.mxu0
  %v2410 = vpop.f32.mrf.mxu0
  %v2411 = vadd.f32 %v2196, %v2410
  %v2412 = vpop.f32.mrf.mxu0
  %2413 = vmatprep.mubr.bf16.mxu0 0
  %2414 = vmatmul.mubr.bf16.gmra.mxu0 %v2161
  %v2415 = vpop.f32.mrf.mxu0
  %v2416 = vadd.f32 %v2196, %v2415
  %v2417 = vpop.f32.mrf.mxu0
  %v2418 = vpop.f32.mrf.mxu0
  %v2419 = vadd.f32 %v2196, %v2418
  %v2420 = vpop.f32.mrf.mxu0
  %2421 = vmatprep.mubr.bf16.mxu0 0
  %2422 = vmatmul.mubr.bf16.gmra.mxu0 %v2162
  %v2423 = vpop.f32.mrf.mxu0
  %v2424 = vadd.f32 %v2196, %v2423
  %v2425 = vpop.f32.mrf.mxu0
  %v2426 = vpop.f32.mrf.mxu0
  %v2427 = vadd.f32 %v2196, %v2426
  %v2428 = vpop.f32.mrf.mxu0
  %2429 = vmatprep.mubr.bf16.mxu0 0
  %2430 = vmatmul.mubr.bf16.gmra.mxu0 %v2163
  %v2431 = vpop.f32.mrf.mxu0
  %v2432 = vadd.f32 %v2196, %v2431
  %v2433 = vpop.f32.mrf.mxu0
  %v2434 = vpop.f32.mrf.mxu0
  %v2435 = vadd.f32 %v2196, %v2434
  %v2436 = vpop.f32.mrf.mxu0
  %2437 = vmatprep.mubr.bf16.mxu0 0
  %2438 = vmatmul.mubr.bf16.gmra.mxu0 %v2164
  %v2439 = vpop.f32.mrf.mxu0
  %v2440 = vadd.f32 %v2196, %v2439
  %v2441 = vpop.f32.mrf.mxu0
  %v2442 = vpop.f32.mrf.mxu0
  %v2443 = vadd.f32 %v2196, %v2442
  %v2444 = vpop.f32.mrf.mxu0
  %2445 = vmatprep.mubr.bf16.mxu0 0
  %2446 = vmatmul.mubr.bf16.gmra.mxu0 %v2165
  %v2447 = vpop.f32.mrf.mxu0
  %v2448 = vadd.f32 %v2196, %v2447
  %v2449 = vpop.f32.mrf.mxu0
  %v2450 = vpop.f32.mrf.mxu0
  %v2451 = vadd.f32 %v2196, %v2450
  %v2452 = vpop.f32.mrf.mxu0
  %2453 = vmatprep.mubr.bf16.mxu0 0
  %2454 = vmatmul.mubr.bf16.gmra.mxu0 %v2166
  %v2455 = vpop.f32.mrf.mxu0
  %v2456 = vadd.f32 %v2196, %v2455
  %v2457 = vpop.f32.mrf.mxu0
  %v2458 = vpop.f32.mrf.mxu0
  %v2459 = vadd.f32 %v2196, %v2458
  %v2460 = vpop.f32.mrf.mxu0
  %2461 = vmatprep.mubr.bf16.mxu0 0
  %2462 = vmatmul.mubr.bf16.gmra.mxu0 %v2167
  %v2463 = vpop.f32.mrf.mxu0
  %v2464 = vadd.f32 %v2196, %v2463
  %v2465 = vpop.f32.mrf.mxu0
  %v2466 = vpop.f32.mrf.mxu0
  %v2467 = vadd.f32 %v2196, %v2466
  %v2468 = vpop.f32.mrf.mxu0
  %2469 = vmatprep.mubr.bf16.mxu0 0
  %2470 = vmatmul.mubr.bf16.gmra.mxu0 %v2168
  %v2471 = vpop.f32.mrf.mxu0
  %v2472 = vadd.f32 %v2196, %v2471
  %v2473 = vpop.f32.mrf.mxu0
  %v2474 = vpop.f32.mrf.mxu0
  %v2475 = vadd.f32 %v2196, %v2474
  %v2476 = vpop.f32.mrf.mxu0
  %2477 = vmatprep.mubr.bf16.mxu0 0
  %2478 = vmatmul.mubr.bf16.gmra.mxu0 %v2169
  %v2479 = vpop.f32.mrf.mxu0
  %v2480 = vadd.f32 %v2196, %v2479
  %v2481 = vpop.f32.mrf.mxu0
  %v2482 = vpop.f32.mrf.mxu0
  %v2483 = vadd.f32 %v2196, %v2482
  %v2484 = vpop.f32.mrf.mxu0
  %2485 = vmatprep.mubr.bf16.mxu0 0
  %2486 = vmatmul.mubr.bf16.gmra.mxu0 %v2170
  %v2487 = vpop.f32.mrf.mxu0
  %v2488 = vadd.f32 %v2196, %v2487
  %v2489 = vpop.f32.mrf.mxu0
  %v2490 = vpop.f32.mrf.mxu0
  %v2491 = vadd.f32 %v2196, %v2490
  %v2492 = vpop.f32.mrf.mxu0
  %2493 = vmatprep.mubr.bf16.mxu0 0
  %2494 = vmatmul.mubr.bf16.gmra.mxu0 %v2171
  %v2495 = vpop.f32.mrf.mxu0
  %v2496 = vadd.f32 %v2196, %v2495
  %v2497 = vpop.f32.mrf.mxu0
  %v2498 = vpop.f32.mrf.mxu0
  %v2499 = vadd.f32 %v2196, %v2498
  %v2500 = vpop.f32.mrf.mxu0
  %2501 = vmatprep.mubr.bf16.mxu0 0
  %2502 = vmatmul.mubr.bf16.gmra.mxu0 %v2172
  %v2503 = vpop.f32.mrf.mxu0
  %v2504 = vadd.f32 %v2196, %v2503
  %v2505 = vpop.f32.mrf.mxu0
  %v2506 = vpop.f32.mrf.mxu0
  %v2507 = vadd.f32 %v2196, %v2506
  %v2508 = vpop.f32.mrf.mxu0
  %2509 = vmatprep.mubr.bf16.mxu0 0
  %2510 = vmatmul.mubr.bf16.gmra.mxu0 %v2173
  %v2511 = vpop.f32.mrf.mxu0
  %v2512 = vadd.f32 %v2196, %v2511
  %v2513 = vpop.f32.mrf.mxu0
  %v2514 = vpop.f32.mrf.mxu0
  %v2515 = vadd.f32 %v2196, %v2514
  %v2516 = vpop.f32.mrf.mxu0
  %2517 = vmatprep.mubr.bf16.mxu0 0
  %2518 = vmatmul.mubr.bf16.gmra.mxu0 %v2174
  %v2519 = vpop.f32.mrf.mxu0
  %v2520 = vadd.f32 %v2196, %v2519
  %v2521 = vpop.f32.mrf.mxu0
  %v2522 = vpop.f32.mrf.mxu0
  %v2523 = vadd.f32 %v2196, %v2522
  %v2524 = vpop.f32.mrf.mxu0
  %2525 = vmatprep.mubr.bf16.mxu0 0
  %2526 = vmatmul.mubr.bf16.gmra.mxu0 %v2175
  %v2527 = vpop.f32.mrf.mxu0
  %v2528 = vadd.f32 %v2196, %v2527
  %v2529 = vpop.f32.mrf.mxu0
  %v2530 = vpop.f32.mrf.mxu0
  %v2531 = vadd.f32 %v2196, %v2530
  %v2532 = vpop.f32.mrf.mxu0
  %2533 = vdwg.mxu0
  %v2534 = vadd.f32 %v2280, %v1626
  %v2535 = vadd.f32 %v2283, %v1627
  %v2536 = vadd.f32 %v2288, %v1628
  %v2537 = vadd.f32 %v2291, %v1629
  %v2538 = vadd.f32 %v2296, %v1630
  %v2539 = vadd.f32 %v2299, %v1631
  %v2540 = vadd.f32 %v2304, %v1632
  %v2541 = vadd.f32 %v2307, %v1633
  %v2542 = vadd.f32 %v2312, %v1634
  %v2543 = vadd.f32 %v2315, %v1635
  %v2544 = vadd.f32 %v2320, %v1636
  %v2545 = vadd.f32 %v2323, %v1637
  %v2546 = vadd.f32 %v2328, %v1638
  %v2547 = vadd.f32 %v2331, %v1639
  %v2548 = vadd.f32 %v2336, %v1640
  %v2549 = vadd.f32 %v2339, %v1641
  %v2550 = vadd.f32 %v2344, %v1642
  %v2551 = vadd.f32 %v2347, %v1643
  %v2552 = vadd.f32 %v2352, %v1644
  %v2553 = vadd.f32 %v2355, %v1645
  %v2554 = vadd.f32 %v2360, %v1646
  %v2555 = vadd.f32 %v2363, %v1647
  %v2556 = vadd.f32 %v2368, %v1648
  %v2557 = vadd.f32 %v2371, %v1649
  %v2558 = vadd.f32 %v2376, %v1650
  %v2559 = vadd.f32 %v2379, %v1651
  %v2560 = vadd.f32 %v2384, %v1652
  %v2561 = vadd.f32 %v2387, %v1653
  %v2562 = vadd.f32 %v2392, %v1654
  %v2563 = vadd.f32 %v2395, %v1655
  %v2564 = vadd.f32 %v2400, %v1656
  %v2565 = vadd.f32 %v2403, %v1657
  %v2566 = vadd.f32 %v2408, %v1658
  %v2567 = vadd.f32 %v2411, %v1659
  %v2568 = vadd.f32 %v2416, %v1660
  %v2569 = vadd.f32 %v2419, %v1661
  %v2570 = vadd.f32 %v2424, %v1662
  %v2571 = vadd.f32 %v2427, %v1663
  %v2572 = vadd.f32 %v2432, %v1664
  %v2573 = vadd.f32 %v2435, %v1665
  %v2574 = vadd.f32 %v2440, %v1666
  %v2575 = vadd.f32 %v2443, %v1667
  %v2576 = vadd.f32 %v2448, %v1668
  %v2577 = vadd.f32 %v2451, %v1669
  %v2578 = vadd.f32 %v2456, %v1670
  %v2579 = vadd.f32 %v2459, %v1671
  %v2580 = vadd.f32 %v2464, %v1672
  %v2581 = vadd.f32 %v2467, %v1673
  %v2582 = vadd.f32 %v2472, %v1674
  %v2583 = vadd.f32 %v2475, %v1675
  %v2584 = vadd.f32 %v2480, %v1676
  %v2585 = vadd.f32 %v2483, %v1677
  %v2586 = vadd.f32 %v2488, %v1678
  %v2587 = vadd.f32 %v2491, %v1679
  %v2588 = vadd.f32 %v2496, %v1680
  %v2589 = vadd.f32 %v2499, %v1681
  %v2590 = vadd.f32 %v2504, %v1682
  %v2591 = vadd.f32 %v2507, %v1683
  %v2592 = vadd.f32 %v2512, %v1684
  %v2593 = vadd.f32 %v2515, %v1685
  %v2594 = vadd.f32 %v2520, %v1686
  %v2595 = vadd.f32 %v2523, %v1687
  %v2596 = vadd.f32 %v2528, %v1688
  %v2597 = vadd.f32 %v2531, %v1689
  %v2598 = vmax.f32 %v2534, 0.0
  %v2599 = vmax.f32 %v2535, 0.0
  %v2600 = vmax.f32 %v2536, 0.0
  %v2601 = vmax.f32 %v2537, 0.0
  %v2602 = vmax.f32 %v2538, 0.0
  %v2603 = vmax.f32 %v2539, 0.0
  %v2604 = vmax.f32 %v2540, 0.0
  %v2605 = vmax.f32 %v2541, 0.0
  %v2606 = vmax.f32 %v2542, 0.0
  %v2607 = vmax.f32 %v2543, 0.0
  %v2608 = vmax.f32 %v2544, 0.0
  %v2609 = vmax.f32 %v2545, 0.0
  %v2610 = vmax.f32 %v2546, 0.0
  %v2611 = vmax.f32 %v2547, 0.0
  %v2612 = vmax.f32 %v2548, 0.0
  %v2613 = vmax.f32 %v2549, 0.0
  %v2614 = vmax.f32 %v2550, 0.0
  %v2615 = vmax.f32 %v2551, 0.0
  %v2616 = vmax.f32 %v2552, 0.0
  %v2617 = vmax.f32 %v2553, 0.0
  %v2618 = vmax.f32 %v2554, 0.0
  %v2619 = vmax.f32 %v2555, 0.0
  %v2620 = vmax.f32 %v2556, 0.0
  %v2621 = vmax.f32 %v2557, 0.0
  %v2622 = vmax.f32 %v2558, 0.0
  %v2623 = vmax.f32 %v2559, 0.0
  %v2624 = vmax.f32 %v2560, 0.0
  %v2625 = vmax.f32 %v2561, 0.0
  %v2626 = vmax.f32 %v2562, 0.0
  %v2627 = vmax.f32 %v2563, 0.0
  %v2628 = vmax.f32 %v2564, 0.0
  %v2629 = vmax.f32 %v2565, 0.0
  %v2630 = vmax.f32 %v2566, 0.0
  %v2631 = vmax.f32 %v2567, 0.0
  %v2632 = vmax.f32 %v2568, 0.0
  %v2633 = vmax.f32 %v2569, 0.0
  %v2634 = vmax.f32 %v2570, 0.0
  %v2635 = vmax.f32 %v2571, 0.0
  %v2636 = vmax.f32 %v2572, 0.0
  %v2637 = vmax.f32 %v2573, 0.0
  %v2638 = vmax.f32 %v2574, 0.0
  %v2639 = vmax.f32 %v2575, 0.0
  %v2640 = vmax.f32 %v2576, 0.0
  %v2641 = vmax.f32 %v2577, 0.0
  %v2642 = vmax.f32 %v2578, 0.0
  %v2643 = vmax.f32 %v2579, 0.0
  %v2644 = vmax.f32 %v2580, 0.0
  %v2645 = vmax.f32 %v2581, 0.0
  %v2646 = vmax.f32 %v2582, 0.0
  %v2647 = vmax.f32 %v2583, 0.0
  %v2648 = vmax.f32 %v2584, 0.0
  %v2649 = vmax.f32 %v2585, 0.0
  %v2650 = vmax.f32 %v2586, 0.0
  %v2651 = vmax.f32 %v2587, 0.0
  %v2652 = vmax.f32 %v2588, 0.0
  %v2653 = vmax.f32 %v2589, 0.0
  %v2654 = vmax.f32 %v2590, 0.0
  %v2655 = vmax.f32 %v2591, 0.0
  %v2656 = vmax.f32 %v2592, 0.0
  %v2657 = vmax.f32 %v2593, 0.0
  %v2658 = vmax.f32 %v2594, 0.0
  %v2659 = vmax.f32 %v2595, 0.0
  %v2660 = vmax.f32 %v2596, 0.0
  %v2661 = vmax.f32 %v2597, 0.0
  %v2662 = vpack.c.bf16 %v2599, %v2598
  %v2663 = vpack.c.bf16 %v2601, %v2600
  %v2664 = vpack.c.bf16 %v2603, %v2602
  %v2665 = vpack.c.bf16 %v2605, %v2604
  %v2666 = vpack.c.bf16 %v2607, %v2606
  %v2667 = vpack.c.bf16 %v2609, %v2608
  %v2668 = vpack.c.bf16 %v2611, %v2610
  %v2669 = vpack.c.bf16 %v2613, %v2612
  %v2670 = vpack.c.bf16 %v2615, %v2614
  %v2671 = vpack.c.bf16 %v2617, %v2616
  %v2672 = vpack.c.bf16 %v2619, %v2618
  %v2673 = vpack.c.bf16 %v2621, %v2620
  %v2674 = vpack.c.bf16 %v2623, %v2622
  %v2675 = vpack.c.bf16 %v2625, %v2624
  %v2676 = vpack.c.bf16 %v2627, %v2626
  %v2677 = vpack.c.bf16 %v2629, %v2628
  %v2678 = vpack.c.bf16 %v2631, %v2630
  %v2679 = vpack.c.bf16 %v2633, %v2632
  %v2680 = vpack.c.bf16 %v2635, %v2634
  %v2681 = vpack.c.bf16 %v2637, %v2636
  %v2682 = vpack.c.bf16 %v2639, %v2638
  %v2683 = vpack.c.bf16 %v2641, %v2640
  %v2684 = vpack.c.bf16 %v2643, %v2642
  %v2685 = vpack.c.bf16 %v2645, %v2644
  %v2686 = vpack.c.bf16 %v2647, %v2646
  %v2687 = vpack.c.bf16 %v2649, %v2648
  %v2688 = vpack.c.bf16 %v2651, %v2650
  %v2689 = vpack.c.bf16 %v2653, %v2652
  %v2690 = vpack.c.bf16 %v2655, %v2654
  %v2691 = vpack.c.bf16 %v2657, %v2656
  %v2692 = vpack.c.bf16 %v2659, %v2658
  %v2693 = vpack.c.bf16 %v2661, %v2660
  %v2694 = vld [vmem:[%s4] sm:$0xf]
  %v2695 = vld [vmem:[%s4 + $0x4] sm:$0xf]
  %v2696 = vld [vmem:[%s4 + $0x8] sm:$0xf]
  %v2697 = vld [vmem:[%s4 + $0xc] sm:$0xf]
  %v2698 = vld [vmem:[%s4 + $0x10] sm:$0xf]
  %v2699 = vld [vmem:[%s4 + $0x14] sm:$0xf]
  %v2700 = vld [vmem:[%s4 + $0x18] sm:$0xf]
  %v2701 = vld [vmem:[%s4 + $0x1c] sm:$0xf]
  %v2702 = vld [vmem:[%s4 + $0x20] sm:$0xf]
  %v2703 = vld [vmem:[%s4 + $0x24] sm:$0xf]
  %v2704 = vld [vmem:[%s4 + $0x28] sm:$0xf]
  %v2705 = vld [vmem:[%s4 + $0x2c] sm:$0xf]
  %v2706 = vld [vmem:[%s4 + $0x30] sm:$0xf]
  %v2707 = vld [vmem:[%s4 + $0x34] sm:$0xf]
  %v2708 = vld [vmem:[%s4 + $0x38] sm:$0xf]
  %v2709 = vld [vmem:[%s4 + $0x3c] sm:$0xf]
  %v2710 = vld [vmem:[%s5] sm:$0x1]
  %v2712 = vlaneseq
  %v2713 = vshrl.u32 %v2712, 7
  %v2714 = vsub.s32 0, %v2713
  %v2715 = vrot.slane %v2710, %v2714
  %v2733 = vunpack.c.l.b16 %v2694
  %v2734 = vunpack.c.l.b16 %v2695
  %v2735 = vunpack.c.l.b16 %v2696
  %v2736 = vunpack.c.l.b16 %v2697
  %v2737 = vunpack.c.l.b16 %v2698
  %v2738 = vunpack.c.l.b16 %v2699
  %v2739 = vunpack.c.l.b16 %v2700
  %v2740 = vunpack.c.l.b16 %v2701
  %v2741 = vunpack.c.l.b16 %v2702
  %v2742 = vunpack.c.l.b16 %v2703
  %v2743 = vunpack.c.l.b16 %v2704
  %v2744 = vunpack.c.l.b16 %v2705
  %v2745 = vunpack.c.l.b16 %v2706
  %v2746 = vunpack.c.l.b16 %v2707
  %v2747 = vunpack.c.l.b16 %v2708
  %v2748 = vunpack.c.l.b16 %v2709
  %v2749 = vpack.c.b16 %v2734, %v2733
  %v2750 = vpack.c.b16 %v2736, %v2735
  %v2751 = vpack.c.b16 %v2738, %v2737
  %v2752 = vpack.c.b16 %v2740, %v2739
  %v2753 = vpack.c.b16 %v2742, %v2741
  %v2754 = vpack.c.b16 %v2744, %v2743
  %v2755 = vpack.c.b16 %v2746, %v2745
  %v2756 = vpack.c.b16 %v2748, %v2747
  %2765 = vmatprep.subr.bf16.mxu0 0
  %2766 = vmatpush1.bf16.msra.mxu0 %v2756
  %2767 = vmatprep.subr.bf16.mxu0 0
  %2768 = vmatpush1.bf16.msra.mxu0 %v2755
  %2769 = vmatprep.subr.bf16.mxu0 0
  %2770 = vmatpush1.bf16.msra.mxu0 %v2754
  %2771 = vmatprep.subr.bf16.mxu0 0
  %2772 = vmatpush1.bf16.msra.mxu0 %v2753
  %2773 = vmatprep.subr.bf16.mxu0 0
  %2774 = vmatpush1.bf16.msra.mxu0 %v2752
  %2775 = vmatprep.subr.bf16.mxu0 0
  %2776 = vmatpush1.bf16.msra.mxu0 %v2751
  %2777 = vmatprep.subr.bf16.mxu0 0
  %2778 = vmatpush1.bf16.msra.mxu0 %v2750
  %2779 = vmatprep.subr.bf16.mxu0 0
  %2780 = vmatpush1.bf16.msra.mxu0 %v2749
  %2781 = vmatprep.subr.bf16.mxu0 0
  %2782 = vmatpush2.bf16.msra.mxu0 0
  %2783 = vmatprep.subr.bf16.mxu0 0
  %2784 = vmatpush2.bf16.msra.mxu0 0
  %2785 = vmatprep.subr.bf16.mxu0 0
  %2786 = vmatpush2.bf16.msra.mxu0 0
  %2787 = vmatprep.subr.bf16.mxu0 0
  %2788 = vmatpush2.bf16.msra.mxu0 0
  %2789 = vmatprep.subr.bf16.mxu0 0
  %2790 = vmatpush2.bf16.msra.mxu0 0
  %2791 = vmatprep.subr.bf16.mxu0 0
  %2792 = vmatpush2.bf16.msra.mxu0 0
  %2793 = vmatprep.subr.bf16.mxu0 0
  %2794 = vmatpush2.bf16.msra.mxu0 0
  %2795 = vmatprep.subr.bf16.mxu0 0
  %2796 = vmatpush2.bf16.msra.mxu0 0
  %2797 = vmatprep.mubr.bf16.mxu0 0
  %2798 = vmatmul.mubr.bf16.gmra.mxu0 %v2662
  %v2799 = vpop.f32.mrf.mxu0
  %v2800 = vadd.f32 %v2715, %v2799
  %v2801 = vpop.f32.mrf.mxu0
  %v2802 = vpop.f32.mrf.mxu0
  %v2803 = vadd.f32 %v2715, %v2802
  %v2804 = vpop.f32.mrf.mxu0
  %2805 = vmatprep.mubr.bf16.mxu0 0
  %2806 = vmatmul.mubr.bf16.gmra.mxu0 %v2663
  %v2807 = vpop.f32.mrf.mxu0
  %v2808 = vadd.f32 %v2715, %v2807
  %v2809 = vpop.f32.mrf.mxu0
  %v2810 = vpop.f32.mrf.mxu0
  %v2811 = vadd.f32 %v2715, %v2810
  %v2812 = vpop.f32.mrf.mxu0
  %2813 = vmatprep.mubr.bf16.mxu0 0
  %2814 = vmatmul.mubr.bf16.gmra.mxu0 %v2664
  %v2815 = vpop.f32.mrf.mxu0
  %v2816 = vadd.f32 %v2715, %v2815
  %v2817 = vpop.f32.mrf.mxu0
  %v2818 = vpop.f32.mrf.mxu0
  %v2819 = vadd.f32 %v2715, %v2818
  %v2820 = vpop.f32.mrf.mxu0
  %2821 = vmatprep.mubr.bf16.mxu0 0
  %2822 = vmatmul.mubr.bf16.gmra.mxu0 %v2665
  %v2823 = vpop.f32.mrf.mxu0
  %v2824 = vadd.f32 %v2715, %v2823
  %v2825 = vpop.f32.mrf.mxu0
  %v2826 = vpop.f32.mrf.mxu0
  %v2827 = vadd.f32 %v2715, %v2826
  %v2828 = vpop.f32.mrf.mxu0
  %2829 = vmatprep.mubr.bf16.mxu0 0
  %2830 = vmatmul.mubr.bf16.gmra.mxu0 %v2666
  %v2831 = vpop.f32.mrf.mxu0
  %v2832 = vadd.f32 %v2715, %v2831
  %v2833 = vpop.f32.mrf.mxu0
  %v2834 = vpop.f32.mrf.mxu0
  %v2835 = vadd.f32 %v2715, %v2834
  %v2836 = vpop.f32.mrf.mxu0
  %2837 = vmatprep.mubr.bf16.mxu0 0
  %2838 = vmatmul.mubr.bf16.gmra.mxu0 %v2667
  %v2839 = vpop.f32.mrf.mxu0
  %v2840 = vadd.f32 %v2715, %v2839
  %v2841 = vpop.f32.mrf.mxu0
  %v2842 = vpop.f32.mrf.mxu0
  %v2843 = vadd.f32 %v2715, %v2842
  %v2844 = vpop.f32.mrf.mxu0
  %2845 = vmatprep.mubr.bf16.mxu0 0
  %2846 = vmatmul.mubr.bf16.gmra.mxu0 %v2668
  %v2847 = vpop.f32.mrf.mxu0
  %v2848 = vadd.f32 %v2715, %v2847
  %v2849 = vpop.f32.mrf.mxu0
  %v2850 = vpop.f32.mrf.mxu0
  %v2851 = vadd.f32 %v2715, %v2850
  %v2852 = vpop.f32.mrf.mxu0
  %2853 = vmatprep.mubr.bf16.mxu0 0
  %2854 = vmatmul.mubr.bf16.gmra.mxu0 %v2669
  %v2855 = vpop.f32.mrf.mxu0
  %v2856 = vadd.f32 %v2715, %v2855
  %v2857 = vpop.f32.mrf.mxu0
  %v2858 = vpop.f32.mrf.mxu0
  %v2859 = vadd.f32 %v2715, %v2858
  %v2860 = vpop.f32.mrf.mxu0
  %2861 = vmatprep.mubr.bf16.mxu0 0
  %2862 = vmatmul.mubr.bf16.gmra.mxu0 %v2670
  %v2863 = vpop.f32.mrf.mxu0
  %v2864 = vadd.f32 %v2715, %v2863
  %v2865 = vpop.f32.mrf.mxu0
  %v2866 = vpop.f32.mrf.mxu0
  %v2867 = vadd.f32 %v2715, %v2866
  %v2868 = vpop.f32.mrf.mxu0
  %2869 = vmatprep.mubr.bf16.mxu0 0
  %2870 = vmatmul.mubr.bf16.gmra.mxu0 %v2671
  %v2871 = vpop.f32.mrf.mxu0
  %v2872 = vadd.f32 %v2715, %v2871
  %v2873 = vpop.f32.mrf.mxu0
  %v2874 = vpop.f32.mrf.mxu0
  %v2875 = vadd.f32 %v2715, %v2874
  %v2876 = vpop.f32.mrf.mxu0
  %2877 = vmatprep.mubr.bf16.mxu0 0
  %2878 = vmatmul.mubr.bf16.gmra.mxu0 %v2672
  %v2879 = vpop.f32.mrf.mxu0
  %v2880 = vadd.f32 %v2715, %v2879
  %v2881 = vpop.f32.mrf.mxu0
  %v2882 = vpop.f32.mrf.mxu0
  %v2883 = vadd.f32 %v2715, %v2882
  %v2884 = vpop.f32.mrf.mxu0
  %2885 = vmatprep.mubr.bf16.mxu0 0
  %2886 = vmatmul.mubr.bf16.gmra.mxu0 %v2673
  %v2887 = vpop.f32.mrf.mxu0
  %v2888 = vadd.f32 %v2715, %v2887
  %v2889 = vpop.f32.mrf.mxu0
  %v2890 = vpop.f32.mrf.mxu0
  %v2891 = vadd.f32 %v2715, %v2890
  %v2892 = vpop.f32.mrf.mxu0
  %2893 = vmatprep.mubr.bf16.mxu0 0
  %2894 = vmatmul.mubr.bf16.gmra.mxu0 %v2674
  %v2895 = vpop.f32.mrf.mxu0
  %v2896 = vadd.f32 %v2715, %v2895
  %v2897 = vpop.f32.mrf.mxu0
  %v2898 = vpop.f32.mrf.mxu0
  %v2899 = vadd.f32 %v2715, %v2898
  %v2900 = vpop.f32.mrf.mxu0
  %2901 = vmatprep.mubr.bf16.mxu0 0
  %2902 = vmatmul.mubr.bf16.gmra.mxu0 %v2675
  %v2903 = vpop.f32.mrf.mxu0
  %v2904 = vadd.f32 %v2715, %v2903
  %v2905 = vpop.f32.mrf.mxu0
  %v2906 = vpop.f32.mrf.mxu0
  %v2907 = vadd.f32 %v2715, %v2906
  %v2908 = vpop.f32.mrf.mxu0
  %2909 = vmatprep.mubr.bf16.mxu0 0
  %2910 = vmatmul.mubr.bf16.gmra.mxu0 %v2676
  %v2911 = vpop.f32.mrf.mxu0
  %v2912 = vadd.f32 %v2715, %v2911
  %v2913 = vpop.f32.mrf.mxu0
  %v2914 = vpop.f32.mrf.mxu0
  %v2915 = vadd.f32 %v2715, %v2914
  %v2916 = vpop.f32.mrf.mxu0
  %2917 = vmatprep.mubr.bf16.mxu0 0
  %2918 = vmatmul.mubr.bf16.gmra.mxu0 %v2677
  %v2919 = vpop.f32.mrf.mxu0
  %v2920 = vadd.f32 %v2715, %v2919
  %v2921 = vpop.f32.mrf.mxu0
  %v2922 = vpop.f32.mrf.mxu0
  %v2923 = vadd.f32 %v2715, %v2922
  %v2924 = vpop.f32.mrf.mxu0
  %2925 = vmatprep.mubr.bf16.mxu0 0
  %2926 = vmatmul.mubr.bf16.gmra.mxu0 %v2678
  %v2927 = vpop.f32.mrf.mxu0
  %v2928 = vadd.f32 %v2715, %v2927
  %v2929 = vpop.f32.mrf.mxu0
  %v2930 = vpop.f32.mrf.mxu0
  %v2931 = vadd.f32 %v2715, %v2930
  %v2932 = vpop.f32.mrf.mxu0
  %2933 = vmatprep.mubr.bf16.mxu0 0
  %2934 = vmatmul.mubr.bf16.gmra.mxu0 %v2679
  %v2935 = vpop.f32.mrf.mxu0
  %v2936 = vadd.f32 %v2715, %v2935
  %v2937 = vpop.f32.mrf.mxu0
  %v2938 = vpop.f32.mrf.mxu0
  %v2939 = vadd.f32 %v2715, %v2938
  %v2940 = vpop.f32.mrf.mxu0
  %2941 = vmatprep.mubr.bf16.mxu0 0
  %2942 = vmatmul.mubr.bf16.gmra.mxu0 %v2680
  %v2943 = vpop.f32.mrf.mxu0
  %v2944 = vadd.f32 %v2715, %v2943
  %v2945 = vpop.f32.mrf.mxu0
  %v2946 = vpop.f32.mrf.mxu0
  %v2947 = vadd.f32 %v2715, %v2946
  %v2948 = vpop.f32.mrf.mxu0
  %2949 = vmatprep.mubr.bf16.mxu0 0
  %2950 = vmatmul.mubr.bf16.gmra.mxu0 %v2681
  %v2951 = vpop.f32.mrf.mxu0
  %v2952 = vadd.f32 %v2715, %v2951
  %v2953 = vpop.f32.mrf.mxu0
  %v2954 = vpop.f32.mrf.mxu0
  %v2955 = vadd.f32 %v2715, %v2954
  %v2956 = vpop.f32.mrf.mxu0
  %2957 = vmatprep.mubr.bf16.mxu0 0
  %2958 = vmatmul.mubr.bf16.gmra.mxu0 %v2682
  %v2959 = vpop.f32.mrf.mxu0
  %v2960 = vadd.f32 %v2715, %v2959
  %v2961 = vpop.f32.mrf.mxu0
  %v2962 = vpop.f32.mrf.mxu0
  %v2963 = vadd.f32 %v2715, %v2962
  %v2964 = vpop.f32.mrf.mxu0
  %2965 = vmatprep.mubr.bf16.mxu0 0
  %2966 = vmatmul.mubr.bf16.gmra.mxu0 %v2683
  %v2967 = vpop.f32.mrf.mxu0
  %v2968 = vadd.f32 %v2715, %v2967
  %v2969 = vpop.f32.mrf.mxu0
  %v2970 = vpop.f32.mrf.mxu0
  %v2971 = vadd.f32 %v2715, %v2970
  %v2972 = vpop.f32.mrf.mxu0
  %2973 = vmatprep.mubr.bf16.mxu0 0
  %2974 = vmatmul.mubr.bf16.gmra.mxu0 %v2684
  %v2975 = vpop.f32.mrf.mxu0
  %v2976 = vadd.f32 %v2715, %v2975
  %v2977 = vpop.f32.mrf.mxu0
  %v2978 = vpop.f32.mrf.mxu0
  %v2979 = vadd.f32 %v2715, %v2978
  %v2980 = vpop.f32.mrf.mxu0
  %2981 = vmatprep.mubr.bf16.mxu0 0
  %2982 = vmatmul.mubr.bf16.gmra.mxu0 %v2685
  %v2983 = vpop.f32.mrf.mxu0
  %v2984 = vadd.f32 %v2715, %v2983
  %v2985 = vpop.f32.mrf.mxu0
  %v2986 = vpop.f32.mrf.mxu0
  %v2987 = vadd.f32 %v2715, %v2986
  %v2988 = vpop.f32.mrf.mxu0
  %2989 = vmatprep.mubr.bf16.mxu0 0
  %2990 = vmatmul.mubr.bf16.gmra.mxu0 %v2686
  %v2991 = vpop.f32.mrf.mxu0
  %v2992 = vadd.f32 %v2715, %v2991
  %v2993 = vpop.f32.mrf.mxu0
  %v2994 = vpop.f32.mrf.mxu0
  %v2995 = vadd.f32 %v2715, %v2994
  %v2996 = vpop.f32.mrf.mxu0
  %2997 = vmatprep.mubr.bf16.mxu0 0
  %2998 = vmatmul.mubr.bf16.gmra.mxu0 %v2687
  %v2999 = vpop.f32.mrf.mxu0
  %v3000 = vadd.f32 %v2715, %v2999
  %v3001 = vpop.f32.mrf.mxu0
  %v3002 = vpop.f32.mrf.mxu0
  %v3003 = vadd.f32 %v2715, %v3002
  %v3004 = vpop.f32.mrf.mxu0
  %3005 = vmatprep.mubr.bf16.mxu0 0
  %3006 = vmatmul.mubr.bf16.gmra.mxu0 %v2688
  %v3007 = vpop.f32.mrf.mxu0
  %v3008 = vadd.f32 %v2715, %v3007
  %v3009 = vpop.f32.mrf.mxu0
  %v3010 = vpop.f32.mrf.mxu0
  %v3011 = vadd.f32 %v2715, %v3010
  %v3012 = vpop.f32.mrf.mxu0
  %3013 = vmatprep.mubr.bf16.mxu0 0
  %3014 = vmatmul.mubr.bf16.gmra.mxu0 %v2689
  %v3015 = vpop.f32.mrf.mxu0
  %v3016 = vadd.f32 %v2715, %v3015
  %v3017 = vpop.f32.mrf.mxu0
  %v3018 = vpop.f32.mrf.mxu0
  %v3019 = vadd.f32 %v2715, %v3018
  %v3020 = vpop.f32.mrf.mxu0
  %3021 = vmatprep.mubr.bf16.mxu0 0
  %3022 = vmatmul.mubr.bf16.gmra.mxu0 %v2690
  %v3023 = vpop.f32.mrf.mxu0
  %v3024 = vadd.f32 %v2715, %v3023
  %v3025 = vpop.f32.mrf.mxu0
  %v3026 = vpop.f32.mrf.mxu0
  %v3027 = vadd.f32 %v2715, %v3026
  %v3028 = vpop.f32.mrf.mxu0
  %3029 = vmatprep.mubr.bf16.mxu0 0
  %3030 = vmatmul.mubr.bf16.gmra.mxu0 %v2691
  %v3031 = vpop.f32.mrf.mxu0
  %v3032 = vadd.f32 %v2715, %v3031
  %v3033 = vpop.f32.mrf.mxu0
  %v3034 = vpop.f32.mrf.mxu0
  %v3035 = vadd.f32 %v2715, %v3034
  %v3036 = vpop.f32.mrf.mxu0
  %3037 = vmatprep.mubr.bf16.mxu0 0
  %3038 = vmatmul.mubr.bf16.gmra.mxu0 %v2692
  %v3039 = vpop.f32.mrf.mxu0
  %v3040 = vadd.f32 %v2715, %v3039
  %v3041 = vpop.f32.mrf.mxu0
  %v3042 = vpop.f32.mrf.mxu0
  %v3043 = vadd.f32 %v2715, %v3042
  %v3044 = vpop.f32.mrf.mxu0
  %3045 = vmatprep.mubr.bf16.mxu0 0
  %3046 = vmatmul.mubr.bf16.gmra.mxu0 %v2693
  %v3047 = vpop.f32.mrf.mxu0
  %v3048 = vadd.f32 %v2715, %v3047
  %v3049 = vpop.f32.mrf.mxu0
  %v3050 = vpop.f32.mrf.mxu0
  %v3051 = vadd.f32 %v2715, %v3050
  %v3052 = vpop.f32.mrf.mxu0
  %3053 = vdwg.mxu0
  %3054 = vst [vmem:[%s6] sm:$0xff] %v2800
  %3055 = vst [vmem:[%s6 + $0x8] sm:$0xff] %v2803
  %3056 = vst [vmem:[%s6 + $0x10] sm:$0xff] %v2808
  %3057 = vst [vmem:[%s6 + $0x18] sm:$0xff] %v2811
  %3058 = vst [vmem:[%s6 + $0x20] sm:$0xff] %v2816
  %3059 = vst [vmem:[%s6 + $0x28] sm:$0xff] %v2819
  %3060 = vst [vmem:[%s6 + $0x30] sm:$0xff] %v2824
  %3061 = vst [vmem:[%s6 + $0x38] sm:$0xff] %v2827
  %3062 = vst [vmem:[%s6 + $0x40] sm:$0xff] %v2832
  %3063 = vst [vmem:[%s6 + $0x48] sm:$0xff] %v2835
  %3064 = vst [vmem:[%s6 + $0x50] sm:$0xff] %v2840
  %3065 = vst [vmem:[%s6 + $0x58] sm:$0xff] %v2843
  %3066 = vst [vmem:[%s6 + $0x60] sm:$0xff] %v2848
  %3067 = vst [vmem:[%s6 + $0x68] sm:$0xff] %v2851
  %3068 = vst [vmem:[%s6 + $0x70] sm:$0xff] %v2856
  %3069 = vst [vmem:[%s6 + $0x78] sm:$0xff] %v2859
  %3070 = vst [vmem:[%s6 + $0x80] sm:$0xff] %v2864
  %3071 = vst [vmem:[%s6 + $0x88] sm:$0xff] %v2867
  %3072 = vst [vmem:[%s6 + $0x90] sm:$0xff] %v2872
  %3073 = vst [vmem:[%s6 + $0x98] sm:$0xff] %v2875
  %3074 = vst [vmem:[%s6 + $0xa0] sm:$0xff] %v2880
  %3075 = vst [vmem:[%s6 + $0xa8] sm:$0xff] %v2883
  %3076 = vst [vmem:[%s6 + $0xb0] sm:$0xff] %v2888
  %3077 = vst [vmem:[%s6 + $0xb8] sm:$0xff] %v2891
  %3078 = vst [vmem:[%s6 + $0xc0] sm:$0xff] %v2896
  %3079 = vst [vmem:[%s6 + $0xc8] sm:$0xff] %v2899
  %3080 = vst [vmem:[%s6 + $0xd0] sm:$0xff] %v2904
  %3081 = vst [vmem:[%s6 + $0xd8] sm:$0xff] %v2907
  %3082 = vst [vmem:[%s6 + $0xe0] sm:$0xff] %v2912
  %3083 = vst [vmem:[%s6 + $0xe8] sm:$0xff] %v2915
  %3084 = vst [vmem:[%s6 + $0xf0] sm:$0xff] %v2920
  %3085 = vst [vmem:[%s6 + $0xf8] sm:$0xff] %v2923
  %3086 = vst [vmem:[%s6 + $0x100] sm:$0xff] %v2928
  %3087 = vst [vmem:[%s6 + $0x108] sm:$0xff] %v2931
  %3088 = vst [vmem:[%s6 + $0x110] sm:$0xff] %v2936
  %3089 = vst [vmem:[%s6 + $0x118] sm:$0xff] %v2939
  %3090 = vst [vmem:[%s6 + $0x120] sm:$0xff] %v2944
  %3091 = vst [vmem:[%s6 + $0x128] sm:$0xff] %v2947
  %3092 = vst [vmem:[%s6 + $0x130] sm:$0xff] %v2952
  %3093 = vst [vmem:[%s6 + $0x138] sm:$0xff] %v2955
  %3094 = vst [vmem:[%s6 + $0x140] sm:$0xff] %v2960
  %3095 = vst [vmem:[%s6 + $0x148] sm:$0xff] %v2963
  %3096 = vst [vmem:[%s6 + $0x150] sm:$0xff] %v2968
  %3097 = vst [vmem:[%s6 + $0x158] sm:$0xff] %v2971
  %3098 = vst [vmem:[%s6 + $0x160] sm:$0xff] %v2976
  %3099 = vst [vmem:[%s6 + $0x168] sm:$0xff] %v2979
  %3100 = vst [vmem:[%s6 + $0x170] sm:$0xff] %v2984
  %3101 = vst [vmem:[%s6 + $0x178] sm:$0xff] %v2987
  %3102 = vst [vmem:[%s6 + $0x180] sm:$0xff] %v2992
  %3103 = vst [vmem:[%s6 + $0x188] sm:$0xff] %v2995
  %3104 = vst [vmem:[%s6 + $0x190] sm:$0xff] %v3000
  %3105 = vst [vmem:[%s6 + $0x198] sm:$0xff] %v3003
  %3106 = vst [vmem:[%s6 + $0x1a0] sm:$0xff] %v3008
  %3107 = vst [vmem:[%s6 + $0x1a8] sm:$0xff] %v3011
  %3108 = vst [vmem:[%s6 + $0x1b0] sm:$0xff] %v3016
  %3109 = vst [vmem:[%s6 + $0x1b8] sm:$0xff] %v3019
  %3110 = vst [vmem:[%s6 + $0x1c0] sm:$0xff] %v3024
  %3111 = vst [vmem:[%s6 + $0x1c8] sm:$0xff] %v3027
  %3112 = vst [vmem:[%s6 + $0x1d0] sm:$0xff] %v3032
  %3113 = vst [vmem:[%s6 + $0x1d8] sm:$0xff] %v3035
  %3114 = vst [vmem:[%s6 + $0x1e0] sm:$0xff] %v3040
  %3115 = vst [vmem:[%s6 + $0x1e8] sm:$0xff] %v3043
  %3116 = vst [vmem:[%s6 + $0x1f0] sm:$0xff] %v3048
  %3117 = vst [vmem:[%s6 + $0x1f8] sm:$0xff] %v3051
  // Predicated region
  $region26: #{residual_mlp_forward.1} parent=0 // pred_check
    _
  $region27: #{residual_mlp_forward.1} parent=0 // pred_check_branch
    %3119 = sbr.rel (0) target = $region29
  $region28: #{residual_mlp_forward.1} parent=0 // pred_region
    _
  $region29: #{residual_mlp_forward.1} parent=0 // pred_fallthru
    _
  // Predicated region
  $region30: #{residual_mlp_forward.1} parent=0 // pred_check
    _
  $region31: #{residual_mlp_forward.1} parent=0 // pred_check_branch
    %3121 = sbr.rel (0) target = $region33
  $region32: #{residual_mlp_forward.1} parent=0 // pred_region
    _
  $region33: #{residual_mlp_forward.1} parent=0 // pred_fallthru
    _

</llo_original>
